<compile_context>
chip_gen: v5e
topology: v5e:2x2
jax: 0.10.0
libtpu: 0.0.40
codegen_flags: <defaults>
</compile_context>

<pallas_src>
import functools

import jax
import jax.numpy as jnp
from jax.experimental import pallas as pl
from jax.experimental.pallas import tpu as pltpu

BN_EPS = 1e-5
LN_EPS = 1e-5


# ----------------------------------------------------------------------------
# Kernel
# ----------------------------------------------------------------------------
def smooth_encoder_kernel(
        x_ref,
        n1s_ref, n1t_ref,
        cw1_ref, cb1_ref, bs1_ref, bt1_ref,
        cw2_ref, cb2_ref, bs2_ref, bt2_ref,
        cw3_ref, cb3_ref, bs3_ref, bt3_ref,
        cw4_ref, cb4_ref, bs4_ref, bt4_ref,
        wl_ref, lb_ref, lng_ref, lnb_ref,
        o_ref,
        *, lp, l_real, matmul_dtype):
    m, _ = x_ref.shape
    md = matmul_dtype

    # Row position inside its (padded) sequence, computed in-kernel.
    row = jax.lax.broadcasted_iota(jnp.int32, (m, 1), 0)
    pos = row % lp
    first_row = pos == 0              # zero the prev tap here (sequence start /
                                      # batch boundary inside the flattened tile)
    nxt_zero = pos >= (l_real - 1)    # zero the nxt tap here: covers the true
                                      # sequence end AND every seq-padding row,
                                      # so padded-row garbage never leaks into
                                      # valid rows (no per-layer re-zeroing).

    # norm1: BatchNorm1d(Cin) in eval mode == per-channel affine (f32).
    x = x_ref[...].astype(jnp.float32) * n1s_ref[...] + n1t_ref[...]

    def conv_bn_relu(h, cw_ref, cb_ref, bs_ref, bt_ref):
        """Conv1d(k=3, pad=1) -> ReLU -> BatchNorm (eval-mode affine).

        The three conv taps are fused into a single MXU matmul: the LHS is the
        lane-concat [prev | h | nxt] (K = 3*Cin); the weight was reshaped to
        (3*Cin, Cout) and pre-cast to matmul_dtype offline.
        """
        c = h.shape[-1]
        zrow = jnp.zeros((1, c), jnp.float32)
        prev = jnp.concatenate([zrow, h[:-1, :]], axis=0)   # prev[i] = h[i-1]
        nxt = jnp.concatenate([h[1:, :], zrow], axis=0)     # nxt[i]  = h[i+1]
        prev = jnp.where(first_row, 0.0, prev)
        nxt = jnp.where(nxt_zero, 0.0, nxt)
        lhs = jnp.concatenate([prev, h, nxt], axis=-1).astype(md)
        y = jnp.dot(lhs, cw_ref[...], preferred_element_type=jnp.float32)
        y = jnp.maximum(y + cb_ref[...], 0.0)               # bias + ReLU
        return y * bs_ref[...] + bt_ref[...]                # BatchNorm affine

    t1 = conv_bn_relu(x, cw1_ref, cb1_ref, bs1_ref, bt1_ref)
    t2 = conv_bn_relu(t1, cw2_ref, cb2_ref, bs2_ref, bt2_ref)
    t3 = conv_bn_relu(t2, cw3_ref, cb3_ref, bs3_ref, bt3_ref)
    t4 = conv_bn_relu(t3, cw4_ref, cb4_ref, bs4_ref, bt4_ref)

    # Linear over the channel concat [t1|t2|t3|t4]: one K-dense matmul
    # (M, 15*hc) @ (15*hc, H) against the un-split, pre-cast weight.
    cat = jnp.concatenate([t1, t2, t3, t4], axis=-1).astype(md)
    y = jnp.dot(cat, wl_ref[...], preferred_element_type=jnp.float32)
    y = y + lb_ref[...]

    # LayerNorm(H): two-pass variance, all f32.
    mu = jnp.mean(y, axis=-1, keepdims=True)
    d = y - mu
    var = jnp.mean(d * d, axis=-1, keepdims=True)
    y = d * jax.lax.rsqrt(var + LN_EPS)
    y = y * lng_ref[...] + lnb_ref[...]

    o_ref[...] = y.astype(o_ref.dtype)


# ----------------------------------------------------------------------------
# Parameter handling
# ----------------------------------------------------------------------------
def _bn_affine(p):
    """Eval-mode BatchNorm -> per-channel scale/shift, shaped (1, C), f32."""
    scale = p["gamma"] / jnp.sqrt(p["var"] + BN_EPS)
    shift = p["beta"] - p["mean"] * scale
    return scale.reshape(1, -1), shift.reshape(1, -1)


def _flatten_params(P, matmul_dtype):
    """PyTorch-layout params -> flat kernel operand list.

    Conv weights are reshaped tap-major to (3*Cin, Cout) (matches the
    [prev|h|nxt] lane-concat LHS) and matmul weights are pre-cast to
    matmul_dtype; all bias / BN / LN params stay f32.
    """
    flat = list(_bn_affine(P["norm1"]))
    for i in range(1, 5):
        w = P[f"cov{i}"]["w"]                                 # (Cout, Cin, 3)
        cout, cin, _ = w.shape
        cw = jnp.transpose(w, (2, 1, 0)).reshape(3 * cin, cout)
        bs, bt = _bn_affine(P[f"norm{i + 1}"])
        flat += [cw.astype(matmul_dtype),
                 P[f"cov{i}"]["b"].reshape(1, -1), bs, bt]
    wl = jnp.transpose(P["linear"]["w"]).astype(matmul_dtype)  # (15*hc, H)
    flat += [wl, P["linear"]["b"].reshape(1, -1)]
    flat += [P["norm6"]["gamma"].reshape(1, -1),
             P["norm6"]["beta"].reshape(1, -1)]
    return flat


# ----------------------------------------------------------------------------
# Wrapper
# ----------------------------------------------------------------------------
def smooth_encoder(x, P, *, target_rows=512, matmul_dtype=jnp.bfloat16,
                   out_dtype=jnp.float32):
    """x: [B, L, C_in] -> [B, L, hidden_size].  Runs the fused Pallas kernel.

    target_rows: matmul rows (tile_batch * padded_seq) per grid step.  ~512
    amortizes the per-step pipeline overhead and fills the MXU M dimension on
    v5e/v6e/v7x; the grid is kept >= 2 steps when B > 1 so the "parallel"
    batch axis shards across v7x's two TensorCores.
    out_dtype: set to jnp.bfloat16 to halve HBM writeback if the consumer
    tolerates it (matters most on v5e).
    """
    B, L, Cin = x.shape
    H = P["norm6"]["gamma"].shape[0]

    lp = ((L + 7) // 8) * 8                   # pad seq len to sublane multiple
    tb = max(1, min(target_rows // lp, B))    # batch elements per grid step
    if B > 1 and tb >= B:
        tb = pl.cdiv(B, 2)                    # keep grid >= 2 (v7x: 2 TCs)
    bp = pl.cdiv(B, tb) * tb                  # pad batch to a tile multiple

    if (bp, lp) != (B, L):
        xp = jnp.zeros((bp, lp, Cin), x.dtype).at[:B, :L].set(x)
    else:
        xp = x
    x2 = xp.reshape(bp * lp, Cin)             # 2-D layout; free HBM reshape

    flat = _flatten_params(P, matmul_dtype)

    def _const(p):                            # full-array, VMEM-resident operand
        return pl.BlockSpec(p.shape, lambda b: (0,) * p.ndim)

    m = tb * lp
    in_specs = [pl.BlockSpec((m, Cin), lambda b: (b, 0))]
    in_specs += [_const(p) for p in flat]

    kernel = functools.partial(smooth_encoder_kernel, lp=lp, l_real=L,
                               matmul_dtype=matmul_dtype)

    out = pl.pallas_call(
        kernel,
        out_shape=jax.ShapeDtypeStruct((bp * lp, H), out_dtype),
        grid_spec=pltpu.PrefetchScalarGridSpec(
            num_scalar_prefetch=0,
            grid=(bp // tb,),
            in_specs=in_specs,
            out_specs=pl.BlockSpec((m, H), lambda b: (b, 0)),
        ),
        compiler_params=pltpu.CompilerParams(
            dimension_semantics=("parallel",)),
    )(x2, *flat)

    return out.reshape(bp, lp, H)[:B, :L, :]


# ----------------------------------------------------------------------------
# Deterministic synthetic parameters (PyTorch-native layout)
# ----------------------------------------------------------------------------
def init_params(key, input_dim, hidden_size):
    hc = hidden_size // 8
    dims = [input_dim, hc, 2 * hc, 4 * hc, 8 * hc]
    keys = iter(jax.random.split(key, 40))

    def bn(c):
        return dict(
            gamma=1.0 + 0.1 * jax.random.normal(next(keys), (c,), jnp.float32),
            beta=0.1 * jax.random.normal(next(keys), (c,), jnp.float32),
            mean=0.1 * jax.random.normal(next(keys), (c,), jnp.float32),
            var=jax.random.uniform(next(keys), (c,), jnp.float32, 0.5, 1.5),
        )

    P = {"norm1": bn(dims[0])}
    for i in range(4):
        cin, cout = dims[i], dims[i + 1]
        P[f"cov{i + 1}"] = dict(
            w=jax.random.normal(next(keys), (cout, cin, 3), jnp.float32)
            / jnp.sqrt(3.0 * cin),
            b=0.1 * jax.random.normal(next(keys), (cout,), jnp.float32),
        )
        P[f"norm{i + 2}"] = bn(cout)
    cat = 15 * hc
    P["linear"] = dict(
        w=jax.random.normal(next(keys), (hidden_size, cat), jnp.float32)
        / jnp.sqrt(float(cat)),
        b=0.1 * jax.random.normal(next(keys), (hidden_size,), jnp.float32),
    )
    P["norm6"] = dict(gamma=jnp.ones((hidden_size,), jnp.float32),
                      beta=jnp.zeros((hidden_size,), jnp.float32))
    return P


# ----------------------------------------------------------------------------
# Plain-JAX reference mirroring Smooth_Encoder.forward (BatchNorm eval mode)
# ----------------------------------------------------------------------------
def smooth_encoder_ref(x, P):
    hi = jax.lax.Precision.HIGHEST

    def bn(h, p):
        return (h - p["mean"]) / jnp.sqrt(p["var"] + BN_EPS) * p["gamma"] + p["beta"]

    def conv1d(h, p):                       # h: [B,L,Cin], w: [Cout,Cin,3], pad=1
        hp = jnp.pad(h, ((0, 0), (1, 1), (0, 0)))
        w = p["w"]
        return (jnp.einsum("blc,oc->blo", hp[:, :-2], w[:, :, 0], precision=hi)
                + jnp.einsum("blc,oc->blo", hp[:, 1:-1], w[:, :, 1], precision=hi)
                + jnp.einsum("blc,oc->blo", hp[:, 2:], w[:, :, 2], precision=hi)
                + p["b"])

    h = bn(x.astype(jnp.float32), P["norm1"])
    t1 = bn(jax.nn.relu(conv1d(h, P["cov1"])), P["norm2"])
    t2 = bn(jax.nn.relu(conv1d(t1, P["cov2"])), P["norm3"])
    t3 = bn(jax.nn.relu(conv1d(t2, P["cov3"])), P["norm4"])
    t4 = bn(jax.nn.relu(conv1d(t3, P["cov4"])), P["norm5"])
    cat = jnp.concatenate([t1, t2, t3, t4], axis=-1)
    y = jnp.einsum("blc,hc->blh", cat, P["linear"]["w"], precision=hi)
    y = y + P["linear"]["b"]
    mu = jnp.mean(y, axis=-1, keepdims=True)
    var = jnp.mean((y - mu) ** 2, axis=-1, keepdims=True)
    y = (y - mu) / jnp.sqrt(var + LN_EPS)
    return y * P["norm6"]["gamma"] + P["norm6"]["beta"]


if __name__ == "__main__":
    key = jax.random.PRNGKey(0)
    k_x, k_p = jax.random.split(key)

    batch, seq = 8, 16
    input_dim = 8             # args.data_type != 'lane_gcn'
    hidden_size = 128         # cov_hidden_channel = 16; lane-dense 128-wide output

    x = jax.random.normal(k_x, (batch, seq, input_dim), jnp.float32)
    P = init_params(k_p, input_dim, hidden_size)

    ref = smooth_encoder_ref(x, P)

    # 1) semantics check with f32 MXU operands.
    out_f32 = jax.block_until_ready(
        smooth_encoder(x, P, matmul_dtype=jnp.float32))
    assert out_f32.shape == (batch, seq, hidden_size)
    err_f32 = float(jnp.max(jnp.abs(out_f32 - ref)))
    assert err_f32 < 2e-2, "f32 kernel mismatch: %e" % err_f32

    # 2) optimized path: bf16 MXU operands/weights, f32 accum + elementwise.
    out_bf16 = jax.block_until_ready(
        smooth_encoder(x, P, matmul_dtype=jnp.bfloat16))
    err_bf16 = float(jnp.max(jnp.abs(out_bf16 - ref)))
    assert err_bf16 < 1e-1, "bf16 kernel mismatch: %e" % err_bf16

    print("KERNEL_OK")
</pallas_src>

<mosaic_0001>
module attributes {stable_mosaic.version = 11 : i64} {
  func.func @smooth_encoder_kernel(%arg0: i32, %arg1: memref<64x8xf32, #tpu.memory_space<vmem>>, %arg2: memref<1x8xf32, #tpu.memory_space<vmem>>, %arg3: memref<1x8xf32, #tpu.memory_space<vmem>>, %arg4: memref<24x16xf32, #tpu.memory_space<vmem>>, %arg5: memref<1x16xf32, #tpu.memory_space<vmem>>, %arg6: memref<1x16xf32, #tpu.memory_space<vmem>>, %arg7: memref<1x16xf32, #tpu.memory_space<vmem>>, %arg8: memref<48x32xf32, #tpu.memory_space<vmem>>, %arg9: memref<1x32xf32, #tpu.memory_space<vmem>>, %arg10: memref<1x32xf32, #tpu.memory_space<vmem>>, %arg11: memref<1x32xf32, #tpu.memory_space<vmem>>, %arg12: memref<96x64xf32, #tpu.memory_space<vmem>>, %arg13: memref<1x64xf32, #tpu.memory_space<vmem>>, %arg14: memref<1x64xf32, #tpu.memory_space<vmem>>, %arg15: memref<1x64xf32, #tpu.memory_space<vmem>>, %arg16: memref<192x128xf32, #tpu.memory_space<vmem>>, %arg17: memref<1x128xf32, #tpu.memory_space<vmem>>, %arg18: memref<1x128xf32, #tpu.memory_space<vmem>>, %arg19: memref<1x128xf32, #tpu.memory_space<vmem>>, %arg20: memref<240x128xf32, #tpu.memory_space<vmem>>, %arg21: memref<1x128xf32, #tpu.memory_space<vmem>>, %arg22: memref<1x128xf32, #tpu.memory_space<vmem>>, %arg23: memref<1x128xf32, #tpu.memory_space<vmem>>, %arg24: memref<64x128xf32, #tpu.memory_space<vmem>>) attributes {dimension_semantics = [#tpu.dimension_semantics<parallel>], iteration_bounds = array<i64: 2>, scalar_prefetch = 0 : i64, scratch_operands = 0 : i64, tpu.core_type = #tpu.core_type<tc>, window_params = [{transform_indices = @transform_0, window_bounds = array<i64: 64, 8>}, {pipeline_mode = #tpu.pipeline_mode<synchronous>, transform_indices = @transform_1, window_bounds = array<i64: 1, 8>}, {pipeline_mode = #tpu.pipeline_mode<synchronous>, transform_indices = @transform_2, window_bounds = array<i64: 1, 8>}, {pipeline_mode = #tpu.pipeline_mode<synchronous>, transform_indices = @transform_3, window_bounds = array<i64: 24, 16>}, {pipeline_mode = #tpu.pipeline_mode<synchronous>, transform_indices = @transform_4, window_bounds = array<i64: 1, 16>}, {pipeline_mode = #tpu.pipeline_mode<synchronous>, transform_indices = @transform_5, window_bounds = array<i64: 1, 16>}, {pipeline_mode = #tpu.pipeline_mode<synchronous>, transform_indices = @transform_6, window_bounds = array<i64: 1, 16>}, {pipeline_mode = #tpu.pipeline_mode<synchronous>, transform_indices = @transform_7, window_bounds = array<i64: 48, 32>}, {pipeline_mode = #tpu.pipeline_mode<synchronous>, transform_indices = @transform_8, window_bounds = array<i64: 1, 32>}, {pipeline_mode = #tpu.pipeline_mode<synchronous>, transform_indices = @transform_9, window_bounds = array<i64: 1, 32>}, {pipeline_mode = #tpu.pipeline_mode<synchronous>, transform_indices = @transform_10, window_bounds = array<i64: 1, 32>}, {pipeline_mode = #tpu.pipeline_mode<synchronous>, transform_indices = @transform_11, window_bounds = array<i64: 96, 64>}, {pipeline_mode = #tpu.pipeline_mode<synchronous>, transform_indices = @transform_12, window_bounds = array<i64: 1, 64>}, {pipeline_mode = #tpu.pipeline_mode<synchronous>, transform_indices = @transform_13, window_bounds = array<i64: 1, 64>}, {pipeline_mode = #tpu.pipeline_mode<synchronous>, transform_indices = @transform_14, window_bounds = array<i64: 1, 64>}, {pipeline_mode = #tpu.pipeline_mode<synchronous>, transform_indices = @transform_15, window_bounds = array<i64: 192, 128>}, {pipeline_mode = #tpu.pipeline_mode<synchronous>, transform_indices = @transform_16, window_bounds = array<i64: 1, 128>}, {pipeline_mode = #tpu.pipeline_mode<synchronous>, transform_indices = @transform_17, window_bounds = array<i64: 1, 128>}, {pipeline_mode = #tpu.pipeline_mode<synchronous>, transform_indices = @transform_18, window_bounds = array<i64: 1, 128>}, {pipeline_mode = #tpu.pipeline_mode<synchronous>, transform_indices = @transform_19, window_bounds = array<i64: 240, 128>}, {pipeline_mode = #tpu.pipeline_mode<synchronous>, transform_indices = @transform_20, window_bounds = array<i64: 1, 128>}, {pipeline_mode = #tpu.pipeline_mode<synchronous>, transform_indices = @transform_21, window_bounds = array<i64: 1, 128>}, {pipeline_mode = #tpu.pipeline_mode<synchronous>, transform_indices = @transform_22, window_bounds = array<i64: 1, 128>}, {transform_indices = @transform_23, window_bounds = array<i64: 64, 128>}]} {
    %0 = tpu.iota {dimensions = array<i32: 0>} : vector<64x1xi32>
    %c16_i32 = arith.constant 16 : i32
    %c0_i32 = arith.constant 0 : i32
    %1 = arith.cmpi eq, %c16_i32, %c0_i32 : i32
    %c1_i32 = arith.constant 1 : i32
    %2 = arith.select %1, %c1_i32, %c16_i32 : i32
    %3 = vector.broadcast %2 : i32 to vector<64x1xi32>
    %4 = arith.remsi %0, %3 : vector<64x1xi32>
    %c0_i32_0 = arith.constant 0 : i32
    %5 = vector.broadcast %c0_i32_0 : i32 to vector<64x1xi32>
    %6 = arith.cmpi ne, %4, %5 : vector<64x1xi32>
    %c0_i32_1 = arith.constant 0 : i32
    %7 = vector.broadcast %c0_i32_1 : i32 to vector<64x1xi32>
    %8 = arith.cmpi slt, %4, %7 : vector<64x1xi32>
    %c0_i32_2 = arith.constant 0 : i32
    %9 = arith.cmpi slt, %2, %c0_i32_2 : i32
    %10 = vector.broadcast %9 : i1 to vector<64x1xi1>
    %11 = vector.broadcast %10 : vector<64x1xi1> to vector<64x1xi1>
    %12 = arith.xori %8, %11 : vector<64x1xi1>
    %13 = arith.andi %12, %6 : vector<64x1xi1>
    %14 = vector.broadcast %2 : i32 to vector<64x1xi32>
    %15 = arith.addi %4, %14 : vector<64x1xi32>
    %16 = arith.select %13, %15, %4 : vector<64x1xi1>, vector<64x1xi32>
    %c0_i32_3 = arith.constant 0 : i32
    %17 = vector.broadcast %c0_i32_3 : i32 to vector<64x1xi32>
    %18 = arith.cmpi eq, %16, %17 : vector<64x1xi32>
    %c15_i32 = arith.constant 15 : i32
    %19 = vector.broadcast %c15_i32 : i32 to vector<64x1xi32>
    %20 = arith.cmpi sge, %16, %19 : vector<64x1xi32>
    %c0 = arith.constant 0 : index
    %c0_4 = arith.constant 0 : index
    %21 = vector.load %arg1[%c0, %c0_4] : memref<64x8xf32, #tpu.memory_space<vmem>>, vector<64x8xf32>
    %c0_5 = arith.constant 0 : index
    %c0_6 = arith.constant 0 : index
    %22 = vector.load %arg2[%c0_5, %c0_6] : memref<1x8xf32, #tpu.memory_space<vmem>>, vector<1x8xf32>
    %23 = vector.broadcast %22 : vector<1x8xf32> to vector<64x8xf32>
    %24 = arith.mulf %21, %23 : vector<64x8xf32>
    %c0_7 = arith.constant 0 : index
    %c0_8 = arith.constant 0 : index
    %25 = vector.load %arg3[%c0_7, %c0_8] : memref<1x8xf32, #tpu.memory_space<vmem>>, vector<1x8xf32>
    %26 = vector.broadcast %25 : vector<1x8xf32> to vector<64x8xf32>
    %27 = arith.addf %24, %26 : vector<64x8xf32>
    %cst = arith.constant 0.000000e+00 : f32
    %28 = vector.broadcast %cst : f32 to vector<1x8xf32>
    %29 = vector.extract_strided_slice %27 {offsets = [0, 0], sizes = [63, 8], strides = [1, 1]} : vector<64x8xf32> to vector<63x8xf32>
    %30 = tpu.concatenate %28, %29 in 0 : vector<1x8xf32>, vector<63x8xf32> -> vector<64x8xf32>
    %31 = vector.extract_strided_slice %27 {offsets = [1, 0], sizes = [63, 8], strides = [1, 1]} : vector<64x8xf32> to vector<63x8xf32>
    %32 = tpu.concatenate %31, %28 in 0 : vector<63x8xf32>, vector<1x8xf32> -> vector<64x8xf32>
    %cst_9 = arith.constant 0.000000e+00 : f32
    %33 = vector.shape_cast %18 : vector<64x1xi1> to vector<64x1xi1>
    %34 = vector.broadcast %33 : vector<64x1xi1> to vector<64x8xi1>
    %35 = vector.broadcast %cst_9 : f32 to vector<64x8xf32>
    %36 = arith.select %34, %35, %30 : vector<64x8xi1>, vector<64x8xf32>
    %cst_10 = arith.constant 0.000000e+00 : f32
    %37 = vector.shape_cast %20 : vector<64x1xi1> to vector<64x1xi1>
    %38 = vector.broadcast %37 : vector<64x1xi1> to vector<64x8xi1>
    %39 = vector.broadcast %cst_10 : f32 to vector<64x8xf32>
    %40 = arith.select %38, %39, %32 : vector<64x8xi1>, vector<64x8xf32>
    %41 = tpu.concatenate %36, %27, %40 in 1 : vector<64x8xf32>, vector<64x8xf32>, vector<64x8xf32> -> vector<64x24xf32>
    %c0_11 = arith.constant 0 : index
    %c0_12 = arith.constant 0 : index
    %42 = vector.load %arg4[%c0_11, %c0_12] : memref<24x16xf32, #tpu.memory_space<vmem>>, vector<24x16xf32>
    %cst_13 = arith.constant dense<0.000000e+00> : vector<64x16xf32>
    %43 = tpu.matmul %41, %42, %cst_13 {dimension_numbers = #tpu.dot_dimension_numbers<[1], [0], [0], [1], [0, 0, 1, 1], [], []>} : vector<64x24xf32>, vector<24x16xf32>, vector<64x16xf32> -> vector<64x16xf32>
    %c0_14 = arith.constant 0 : index
    %c0_15 = arith.constant 0 : index
    %44 = vector.load %arg5[%c0_14, %c0_15] : memref<1x16xf32, #tpu.memory_space<vmem>>, vector<1x16xf32>
    %45 = vector.broadcast %44 : vector<1x16xf32> to vector<64x16xf32>
    %46 = arith.addf %43, %45 : vector<64x16xf32>
    %cst_16 = arith.constant 0.000000e+00 : f32
    %47 = vector.broadcast %cst_16 : f32 to vector<64x16xf32>
    %48 = arith.maximumf %46, %47 : vector<64x16xf32>
    %c0_17 = arith.constant 0 : index
    %c0_18 = arith.constant 0 : index
    %49 = vector.load %arg6[%c0_17, %c0_18] : memref<1x16xf32, #tpu.memory_space<vmem>>, vector<1x16xf32>
    %50 = vector.broadcast %49 : vector<1x16xf32> to vector<64x16xf32>
    %51 = arith.mulf %48, %50 : vector<64x16xf32>
    %c0_19 = arith.constant 0 : index
    %c0_20 = arith.constant 0 : index
    %52 = vector.load %arg7[%c0_19, %c0_20] : memref<1x16xf32, #tpu.memory_space<vmem>>, vector<1x16xf32>
    %53 = vector.broadcast %52 : vector<1x16xf32> to vector<64x16xf32>
    %54 = arith.addf %51, %53 : vector<64x16xf32>
    %cst_21 = arith.constant 0.000000e+00 : f32
    %55 = vector.broadcast %cst_21 : f32 to vector<1x16xf32>
    %56 = vector.extract_strided_slice %54 {offsets = [0, 0], sizes = [63, 16], strides = [1, 1]} : vector<64x16xf32> to vector<63x16xf32>
    %57 = tpu.concatenate %55, %56 in 0 : vector<1x16xf32>, vector<63x16xf32> -> vector<64x16xf32>
    %58 = vector.extract_strided_slice %54 {offsets = [1, 0], sizes = [63, 16], strides = [1, 1]} : vector<64x16xf32> to vector<63x16xf32>
    %59 = tpu.concatenate %58, %55 in 0 : vector<63x16xf32>, vector<1x16xf32> -> vector<64x16xf32>
    %cst_22 = arith.constant 0.000000e+00 : f32
    %60 = vector.shape_cast %18 : vector<64x1xi1> to vector<64x1xi1>
    %61 = vector.broadcast %60 : vector<64x1xi1> to vector<64x16xi1>
    %62 = vector.broadcast %cst_22 : f32 to vector<64x16xf32>
    %63 = arith.select %61, %62, %57 : vector<64x16xi1>, vector<64x16xf32>
    %cst_23 = arith.constant 0.000000e+00 : f32
    %64 = vector.shape_cast %20 : vector<64x1xi1> to vector<64x1xi1>
    %65 = vector.broadcast %64 : vector<64x1xi1> to vector<64x16xi1>
    %66 = vector.broadcast %cst_23 : f32 to vector<64x16xf32>
    %67 = arith.select %65, %66, %59 : vector<64x16xi1>, vector<64x16xf32>
    %68 = tpu.concatenate %63, %54, %67 in 1 : vector<64x16xf32>, vector<64x16xf32>, vector<64x16xf32> -> vector<64x48xf32>
    %c0_24 = arith.constant 0 : index
    %c0_25 = arith.constant 0 : index
    %69 = vector.load %arg8[%c0_24, %c0_25] : memref<48x32xf32, #tpu.memory_space<vmem>>, vector<48x32xf32>
    %cst_26 = arith.constant dense<0.000000e+00> : vector<64x32xf32>
    %70 = tpu.matmul %68, %69, %cst_26 {dimension_numbers = #tpu.dot_dimension_numbers<[1], [0], [0], [1], [0, 0, 1, 1], [], []>} : vector<64x48xf32>, vector<48x32xf32>, vector<64x32xf32> -> vector<64x32xf32>
    %c0_27 = arith.constant 0 : index
    %c0_28 = arith.constant 0 : index
    %71 = vector.load %arg9[%c0_27, %c0_28] : memref<1x32xf32, #tpu.memory_space<vmem>>, vector<1x32xf32>
    %72 = vector.broadcast %71 : vector<1x32xf32> to vector<64x32xf32>
    %73 = arith.addf %70, %72 : vector<64x32xf32>
    %cst_29 = arith.constant 0.000000e+00 : f32
    %74 = vector.broadcast %cst_29 : f32 to vector<64x32xf32>
    %75 = arith.maximumf %73, %74 : vector<64x32xf32>
    %c0_30 = arith.constant 0 : index
    %c0_31 = arith.constant 0 : index
    %76 = vector.load %arg10[%c0_30, %c0_31] : memref<1x32xf32, #tpu.memory_space<vmem>>, vector<1x32xf32>
    %77 = vector.broadcast %76 : vector<1x32xf32> to vector<64x32xf32>
    %78 = arith.mulf %75, %77 : vector<64x32xf32>
    %c0_32 = arith.constant 0 : index
    %c0_33 = arith.constant 0 : index
    %79 = vector.load %arg11[%c0_32, %c0_33] : memref<1x32xf32, #tpu.memory_space<vmem>>, vector<1x32xf32>
    %80 = vector.broadcast %79 : vector<1x32xf32> to vector<64x32xf32>
    %81 = arith.addf %78, %80 : vector<64x32xf32>
    %cst_34 = arith.constant 0.000000e+00 : f32
    %82 = vector.broadcast %cst_34 : f32 to vector<1x32xf32>
    %83 = vector.extract_strided_slice %81 {offsets = [0, 0], sizes = [63, 32], strides = [1, 1]} : vector<64x32xf32> to vector<63x32xf32>
    %84 = tpu.concatenate %82, %83 in 0 : vector<1x32xf32>, vector<63x32xf32> -> vector<64x32xf32>
    %85 = vector.extract_strided_slice %81 {offsets = [1, 0], sizes = [63, 32], strides = [1, 1]} : vector<64x32xf32> to vector<63x32xf32>
    %86 = tpu.concatenate %85, %82 in 0 : vector<63x32xf32>, vector<1x32xf32> -> vector<64x32xf32>
    %cst_35 = arith.constant 0.000000e+00 : f32
    %87 = vector.shape_cast %18 : vector<64x1xi1> to vector<64x1xi1>
    %88 = vector.broadcast %87 : vector<64x1xi1> to vector<64x32xi1>
    %89 = vector.broadcast %cst_35 : f32 to vector<64x32xf32>
    %90 = arith.select %88, %89, %84 : vector<64x32xi1>, vector<64x32xf32>
    %cst_36 = arith.constant 0.000000e+00 : f32
    %91 = vector.shape_cast %20 : vector<64x1xi1> to vector<64x1xi1>
    %92 = vector.broadcast %91 : vector<64x1xi1> to vector<64x32xi1>
    %93 = vector.broadcast %cst_36 : f32 to vector<64x32xf32>
    %94 = arith.select %92, %93, %86 : vector<64x32xi1>, vector<64x32xf32>
    %95 = tpu.concatenate %90, %81, %94 in 1 : vector<64x32xf32>, vector<64x32xf32>, vector<64x32xf32> -> vector<64x96xf32>
    %c0_37 = arith.constant 0 : index
    %c0_38 = arith.constant 0 : index
    %96 = vector.load %arg12[%c0_37, %c0_38] : memref<96x64xf32, #tpu.memory_space<vmem>>, vector<96x64xf32>
    %cst_39 = arith.constant dense<0.000000e+00> : vector<64x64xf32>
    %97 = tpu.matmul %95, %96, %cst_39 {dimension_numbers = #tpu.dot_dimension_numbers<[1], [0], [0], [1], [0, 0, 1, 1], [], []>} : vector<64x96xf32>, vector<96x64xf32>, vector<64x64xf32> -> vector<64x64xf32>
    %c0_40 = arith.constant 0 : index
    %c0_41 = arith.constant 0 : index
    %98 = vector.load %arg13[%c0_40, %c0_41] : memref<1x64xf32, #tpu.memory_space<vmem>>, vector<1x64xf32>
    %99 = vector.broadcast %98 : vector<1x64xf32> to vector<64x64xf32>
    %100 = arith.addf %97, %99 : vector<64x64xf32>
    %cst_42 = arith.constant 0.000000e+00 : f32
    %101 = vector.broadcast %cst_42 : f32 to vector<64x64xf32>
    %102 = arith.maximumf %100, %101 : vector<64x64xf32>
    %c0_43 = arith.constant 0 : index
    %c0_44 = arith.constant 0 : index
    %103 = vector.load %arg14[%c0_43, %c0_44] : memref<1x64xf32, #tpu.memory_space<vmem>>, vector<1x64xf32>
    %104 = vector.broadcast %103 : vector<1x64xf32> to vector<64x64xf32>
    %105 = arith.mulf %102, %104 : vector<64x64xf32>
    %c0_45 = arith.constant 0 : index
    %c0_46 = arith.constant 0 : index
    %106 = vector.load %arg15[%c0_45, %c0_46] : memref<1x64xf32, #tpu.memory_space<vmem>>, vector<1x64xf32>
    %107 = vector.broadcast %106 : vector<1x64xf32> to vector<64x64xf32>
    %108 = arith.addf %105, %107 : vector<64x64xf32>
    %cst_47 = arith.constant 0.000000e+00 : f32
    %109 = vector.broadcast %cst_47 : f32 to vector<1x64xf32>
    %110 = vector.extract_strided_slice %108 {offsets = [0, 0], sizes = [63, 64], strides = [1, 1]} : vector<64x64xf32> to vector<63x64xf32>
    %111 = tpu.concatenate %109, %110 in 0 : vector<1x64xf32>, vector<63x64xf32> -> vector<64x64xf32>
    %112 = vector.extract_strided_slice %108 {offsets = [1, 0], sizes = [63, 64], strides = [1, 1]} : vector<64x64xf32> to vector<63x64xf32>
    %113 = tpu.concatenate %112, %109 in 0 : vector<63x64xf32>, vector<1x64xf32> -> vector<64x64xf32>
    %cst_48 = arith.constant 0.000000e+00 : f32
    %114 = vector.shape_cast %18 : vector<64x1xi1> to vector<64x1xi1>
    %115 = vector.broadcast %114 : vector<64x1xi1> to vector<64x64xi1>
    %116 = vector.broadcast %cst_48 : f32 to vector<64x64xf32>
    %117 = arith.select %115, %116, %111 : vector<64x64xi1>, vector<64x64xf32>
    %cst_49 = arith.constant 0.000000e+00 : f32
    %118 = vector.shape_cast %20 : vector<64x1xi1> to vector<64x1xi1>
    %119 = vector.broadcast %118 : vector<64x1xi1> to vector<64x64xi1>
    %120 = vector.broadcast %cst_49 : f32 to vector<64x64xf32>
    %121 = arith.select %119, %120, %113 : vector<64x64xi1>, vector<64x64xf32>
    %122 = tpu.concatenate %117, %108, %121 in 1 : vector<64x64xf32>, vector<64x64xf32>, vector<64x64xf32> -> vector<64x192xf32>
    %c0_50 = arith.constant 0 : index
    %c0_51 = arith.constant 0 : index
    %123 = vector.load %arg16[%c0_50, %c0_51] : memref<192x128xf32, #tpu.memory_space<vmem>>, vector<192x128xf32>
    %cst_52 = arith.constant dense<0.000000e+00> : vector<64x128xf32>
    %124 = tpu.matmul %122, %123, %cst_52 {dimension_numbers = #tpu.dot_dimension_numbers<[1], [0], [0], [1], [0, 0, 1, 1], [], []>} : vector<64x192xf32>, vector<192x128xf32>, vector<64x128xf32> -> vector<64x128xf32>
    %c0_53 = arith.constant 0 : index
    %c0_54 = arith.constant 0 : index
    %125 = vector.load %arg17[%c0_53, %c0_54] : memref<1x128xf32, #tpu.memory_space<vmem>>, vector<1x128xf32>
    %126 = vector.broadcast %125 : vector<1x128xf32> to vector<64x128xf32>
    %127 = arith.addf %124, %126 : vector<64x128xf32>
    %cst_55 = arith.constant 0.000000e+00 : f32
    %128 = vector.broadcast %cst_55 : f32 to vector<64x128xf32>
    %129 = arith.maximumf %127, %128 : vector<64x128xf32>
    %c0_56 = arith.constant 0 : index
    %c0_57 = arith.constant 0 : index
    %130 = vector.load %arg18[%c0_56, %c0_57] : memref<1x128xf32, #tpu.memory_space<vmem>>, vector<1x128xf32>
    %131 = vector.broadcast %130 : vector<1x128xf32> to vector<64x128xf32>
    %132 = arith.mulf %129, %131 : vector<64x128xf32>
    %c0_58 = arith.constant 0 : index
    %c0_59 = arith.constant 0 : index
    %133 = vector.load %arg19[%c0_58, %c0_59] : memref<1x128xf32, #tpu.memory_space<vmem>>, vector<1x128xf32>
    %134 = vector.broadcast %133 : vector<1x128xf32> to vector<64x128xf32>
    %135 = arith.addf %132, %134 : vector<64x128xf32>
    %136 = tpu.concatenate %54, %81, %108, %135 in 1 : vector<64x16xf32>, vector<64x32xf32>, vector<64x64xf32>, vector<64x128xf32> -> vector<64x240xf32>
    %c0_60 = arith.constant 0 : index
    %c0_61 = arith.constant 0 : index
    %137 = vector.load %arg20[%c0_60, %c0_61] : memref<240x128xf32, #tpu.memory_space<vmem>>, vector<240x128xf32>
    %cst_62 = arith.constant dense<0.000000e+00> : vector<64x128xf32>
    %138 = tpu.matmul %136, %137, %cst_62 {dimension_numbers = #tpu.dot_dimension_numbers<[1], [0], [0], [1], [0, 0, 1, 1], [], []>} : vector<64x240xf32>, vector<240x128xf32>, vector<64x128xf32> -> vector<64x128xf32>
    %c0_63 = arith.constant 0 : index
    %c0_64 = arith.constant 0 : index
    %139 = vector.load %arg21[%c0_63, %c0_64] : memref<1x128xf32, #tpu.memory_space<vmem>>, vector<1x128xf32>
    %140 = vector.broadcast %139 : vector<1x128xf32> to vector<64x128xf32>
    %141 = arith.addf %138, %140 : vector<64x128xf32>
    %cst_65 = arith.constant dense<0.000000e+00> : vector<64xf32>
    %142 = vector.multi_reduction <add>, %141, %cst_65 [1] : vector<64x128xf32> to vector<64xf32>
    %143 = vector.shape_cast %142 : vector<64xf32> to vector<64x1xf32>
    %cst_66 = arith.constant 1.280000e+02 : f32
    %144 = vector.broadcast %cst_66 : f32 to vector<64x1xf32>
    %145 = arith.divf %143, %144 : vector<64x1xf32>
    %146 = vector.broadcast %145 : vector<64x1xf32> to vector<64x128xf32>
    %147 = arith.subf %141, %146 : vector<64x128xf32>
    %148 = arith.mulf %147, %147 : vector<64x128xf32>
    %cst_67 = arith.constant dense<0.000000e+00> : vector<64xf32>
    %149 = vector.multi_reduction <add>, %148, %cst_67 [1] : vector<64x128xf32> to vector<64xf32>
    %150 = vector.shape_cast %149 : vector<64xf32> to vector<64x1xf32>
    %cst_68 = arith.constant 1.280000e+02 : f32
    %151 = vector.broadcast %cst_68 : f32 to vector<64x1xf32>
    %152 = arith.divf %150, %151 : vector<64x1xf32>
    %cst_69 = arith.constant 9.99999974E-6 : f32
    %153 = vector.broadcast %cst_69 : f32 to vector<64x1xf32>
    %154 = arith.addf %152, %153 : vector<64x1xf32>
    %155 = math.rsqrt %154 : vector<64x1xf32>
    %156 = vector.broadcast %155 : vector<64x1xf32> to vector<64x128xf32>
    %157 = arith.mulf %147, %156 : vector<64x128xf32>
    %c0_70 = arith.constant 0 : index
    %c0_71 = arith.constant 0 : index
    %158 = vector.load %arg22[%c0_70, %c0_71] : memref<1x128xf32, #tpu.memory_space<vmem>>, vector<1x128xf32>
    %159 = vector.broadcast %158 : vector<1x128xf32> to vector<64x128xf32>
    %160 = arith.mulf %157, %159 : vector<64x128xf32>
    %c0_72 = arith.constant 0 : index
    %c0_73 = arith.constant 0 : index
    %161 = vector.load %arg23[%c0_72, %c0_73] : memref<1x128xf32, #tpu.memory_space<vmem>>, vector<1x128xf32>
    %162 = vector.broadcast %161 : vector<1x128xf32> to vector<64x128xf32>
    %163 = arith.addf %160, %162 : vector<64x128xf32>
    %c0_74 = arith.constant 0 : index
    %c0_75 = arith.constant 0 : index
    %164 = vector.load %arg24[%c0_74, %c0_75] : memref<64x128xf32, #tpu.memory_space<vmem>>, vector<64x128xf32>
    tpu.vector_store %arg24[%c0_74, %c0_75], %163 {strides = array<i32>} : memref<64x128xf32, #tpu.memory_space<vmem>>, vector<64x128xf32>,
    return
  }
  func.func @transform_0(%arg0: i32) -> (i32, i32) {
    %c0_i32 = arith.constant 0 : i32
    %c0_i32_0 = arith.constant 0 : i32
    return %arg0, %c0_i32 : i32, i32
  }
  func.func @transform_1(%arg0: i32) -> (i32, i32) {
    %c0_i32 = arith.constant 0 : i32
    %c0_i32_0 = arith.constant 0 : i32
    %c0_i32_1 = arith.constant 0 : i32
    return %c0_i32, %c0_i32_0 : i32, i32
  }
  func.func @transform_2(%arg0: i32) -> (i32, i32) {
    %c0_i32 = arith.constant 0 : i32
    %c0_i32_0 = arith.constant 0 : i32
    %c0_i32_1 = arith.constant 0 : i32
    return %c0_i32, %c0_i32_0 : i32, i32
  }
  func.func @transform_3(%arg0: i32) -> (i32, i32) {
    %c0_i32 = arith.constant 0 : i32
    %c0_i32_0 = arith.constant 0 : i32
    %c0_i32_1 = arith.constant 0 : i32
    return %c0_i32, %c0_i32_0 : i32, i32
  }
  func.func @transform_4(%arg0: i32) -> (i32, i32) {
    %c0_i32 = arith.constant 0 : i32
    %c0_i32_0 = arith.constant 0 : i32
    %c0_i32_1 = arith.constant 0 : i32
    return %c0_i32, %c0_i32_0 : i32, i32
  }
  func.func @transform_5(%arg0: i32) -> (i32, i32) {
    %c0_i32 = arith.constant 0 : i32
    %c0_i32_0 = arith.constant 0 : i32
    %c0_i32_1 = arith.constant 0 : i32
    return %c0_i32, %c0_i32_0 : i32, i32
  }
  func.func @transform_6(%arg0: i32) -> (i32, i32) {
    %c0_i32 = arith.constant 0 : i32
    %c0_i32_0 = arith.constant 0 : i32
    %c0_i32_1 = arith.constant 0 : i32
    return %c0_i32, %c0_i32_0 : i32, i32
  }
  func.func @transform_7(%arg0: i32) -> (i32, i32) {
    %c0_i32 = arith.constant 0 : i32
    %c0_i32_0 = arith.constant 0 : i32
    %c0_i32_1 = arith.constant 0 : i32
    return %c0_i32, %c0_i32_0 : i32, i32
  }
  func.func @transform_8(%arg0: i32) -> (i32, i32) {
    %c0_i32 = arith.constant 0 : i32
    %c0_i32_0 = arith.constant 0 : i32
    %c0_i32_1 = arith.constant 0 : i32
    return %c0_i32, %c0_i32_0 : i32, i32
  }
  func.func @transform_9(%arg0: i32) -> (i32, i32) {
    %c0_i32 = arith.constant 0 : i32
    %c0_i32_0 = arith.constant 0 : i32
    %c0_i32_1 = arith.constant 0 : i32
    return %c0_i32, %c0_i32_0 : i32, i32
  }
  func.func @transform_10(%arg0: i32) -> (i32, i32) {
    %c0_i32 = arith.constant 0 : i32
    %c0_i32_0 = arith.constant 0 : i32
    %c0_i32_1 = arith.constant 0 : i32
    return %c0_i32, %c0_i32_0 : i32, i32
  }
  func.func @transform_11(%arg0: i32) -> (i32, i32) {
    %c0_i32 = arith.constant 0 : i32
    %c0_i32_0 = arith.constant 0 : i32
    %c0_i32_1 = arith.constant 0 : i32
    return %c0_i32, %c0_i32_0 : i32, i32
  }
  func.func @transform_12(%arg0: i32) -> (i32, i32) {
    %c0_i32 = arith.constant 0 : i32
    %c0_i32_0 = arith.constant 0 : i32
    %c0_i32_1 = arith.constant 0 : i32
    return %c0_i32, %c0_i32_0 : i32, i32
  }
  func.func @transform_13(%arg0: i32) -> (i32, i32) {
    %c0_i32 = arith.constant 0 : i32
    %c0_i32_0 = arith.constant 0 : i32
    %c0_i32_1 = arith.constant 0 : i32
    return %c0_i32, %c0_i32_0 : i32, i32
  }
  func.func @transform_14(%arg0: i32) -> (i32, i32) {
    %c0_i32 = arith.constant 0 : i32
    %c0_i32_0 = arith.constant 0 : i32
    %c0_i32_1 = arith.constant 0 : i32
    return %c0_i32, %c0_i32_0 : i32, i32
  }
  func.func @transform_15(%arg0: i32) -> (i32, i32) {
    %c0_i32 = arith.constant 0 : i32
    %c0_i32_0 = arith.constant 0 : i32
    %c0_i32_1 = arith.constant 0 : i32
    return %c0_i32, %c0_i32_0 : i32, i32
  }
  func.func @transform_16(%arg0: i32) -> (i32, i32) {
    %c0_i32 = arith.constant 0 : i32
    %c0_i32_0 = arith.constant 0 : i32
    %c0_i32_1 = arith.constant 0 : i32
    return %c0_i32, %c0_i32_0 : i32, i32
  }
  func.func @transform_17(%arg0: i32) -> (i32, i32) {
    %c0_i32 = arith.constant 0 : i32
    %c0_i32_0 = arith.constant 0 : i32
    %c0_i32_1 = arith.constant 0 : i32
    return %c0_i32, %c0_i32_0 : i32, i32
  }
  func.func @transform_18(%arg0: i32) -> (i32, i32) {
    %c0_i32 = arith.constant 0 : i32
    %c0_i32_0 = arith.constant 0 : i32
    %c0_i32_1 = arith.constant 0 : i32
    return %c0_i32, %c0_i32_0 : i32, i32
  }
  func.func @transform_19(%arg0: i32) -> (i32, i32) {
    %c0_i32 = arith.constant 0 : i32
    %c0_i32_0 = arith.constant 0 : i32
    %c0_i32_1 = arith.constant 0 : i32
    return %c0_i32, %c0_i32_0 : i32, i32
  }
  func.func @transform_20(%arg0: i32) -> (i32, i32) {
    %c0_i32 = arith.constant 0 : i32
    %c0_i32_0 = arith.constant 0 : i32
    %c0_i32_1 = arith.constant 0 : i32
    return %c0_i32, %c0_i32_0 : i32, i32
  }
  func.func @transform_21(%arg0: i32) -> (i32, i32) {
    %c0_i32 = arith.constant 0 : i32
    %c0_i32_0 = arith.constant 0 : i32
    %c0_i32_1 = arith.constant 0 : i32
    return %c0_i32, %c0_i32_0 : i32, i32
  }
  func.func @transform_22(%arg0: i32) -> (i32, i32) {
    %c0_i32 = arith.constant 0 : i32
    %c0_i32_0 = arith.constant 0 : i32
    %c0_i32_1 = arith.constant 0 : i32
    return %c0_i32, %c0_i32_0 : i32, i32
  }
  func.func @transform_23(%arg0: i32) -> (i32, i32) {
    %c0_i32 = arith.constant 0 : i32
    %c0_i32_0 = arith.constant 0 : i32
    return %arg0, %c0_i32 : i32, i32
  }
}

</mosaic_0001>

<llo_original>
// kernel: tpu_custom_call.1
$region0: #{tpu_custom_call.1}
  #allocation0 [shape = 'u32[]', space=smem, size = 0x4, offset = 0x4, fixed_abs, tag = 'smem constant byte address 0x4 - core index']
  #allocation1 [shape = 'u32[72,128]{1,0:T(1,128)}', space=vmem, size = 0x9000, scoped, tag = 'internal scratch']
  %s0 = inlined_call_operand.vmem [shape: f32[128,8], index: 0, kind: input, shape index: {}]
  %s1 = inlined_call_operand.vmem [shape: f32[1,8], index: 1, kind: input, shape index: {}]
  %s2 = inlined_call_operand.vmem [shape: f32[1,8], index: 2, kind: input, shape index: {}]
  %s3 = inlined_call_operand.vmem [shape: f32[24,16], index: 3, kind: input, shape index: {}]
  %s4 = inlined_call_operand.vmem [shape: f32[1,16], index: 4, kind: input, shape index: {}]
  %s5 = inlined_call_operand.vmem [shape: f32[1,16], index: 5, kind: input, shape index: {}]
  %s6 = inlined_call_operand.vmem [shape: f32[1,16], index: 6, kind: input, shape index: {}]
  %s7 = inlined_call_operand.vmem [shape: f32[48,32], index: 7, kind: input, shape index: {}]
  %s8 = inlined_call_operand.vmem [shape: f32[1,32], index: 8, kind: input, shape index: {}]
  %s9 = inlined_call_operand.vmem [shape: f32[1,32], index: 9, kind: input, shape index: {}]
  %s10 = inlined_call_operand.vmem [shape: f32[1,32], index: 10, kind: input, shape index: {}]
  %s11 = inlined_call_operand.vmem [shape: f32[96,64], index: 11, kind: input, shape index: {}]
  %s12 = inlined_call_operand.vmem [shape: f32[1,64], index: 12, kind: input, shape index: {}]
  %s13 = inlined_call_operand.vmem [shape: f32[1,64], index: 13, kind: input, shape index: {}]
  %s14 = inlined_call_operand.vmem [shape: f32[1,64], index: 14, kind: input, shape index: {}]
  %s15 = inlined_call_operand.hbm [shape: f32[192,128], index: 15, kind: input, shape index: {}]
  %s16 = inlined_call_operand.vmem [shape: f32[1,128], index: 16, kind: input, shape index: {}]
  %s17 = inlined_call_operand.vmem [shape: f32[1,128], index: 17, kind: input, shape index: {}]
  %s18 = inlined_call_operand.vmem [shape: f32[1,128], index: 18, kind: input, shape index: {}]
  %s19 = inlined_call_operand.vmem [shape: f32[240,128], index: 19, kind: input, shape index: {}]
  %s20 = inlined_call_operand.vmem [shape: f32[1,128], index: 20, kind: input, shape index: {}]
  %s21 = inlined_call_operand.vmem [shape: f32[1,128], index: 21, kind: input, shape index: {}]
  %s22 = inlined_call_operand.vmem [shape: f32[1,128], index: 22, kind: input, shape index: {}]
  %s23 = inlined_call_operand.hbm [shape: f32[128,128], index: 23, kind: output, shape index: {}]
  %s24 = sld [smem:[#allocation0]]
  $region129: #{tpu_custom_call.1} parent=0
    _
  %s26 = ssub.s32 1, %s24
  %s27 = scalar_select 0, %s26, %s24
  $region1: #{tpu_custom_call.1} parent=0
    #allocation2 [shape = 'u8[98304]{0}', space=vmem, size = 0x18000, scoped, tag = 'input window, operand 15, single buffered']
    #allocation3 [shape = 's32[2]{0}', space=sflag, size = 0x8, scoped, tag = 'scoped memory for tpu_custom_call.1']
    #allocation4 [shape = 's32[2]{0}', space=sflag, size = 0x8, scoped, tag = 'scoped memory for tpu_custom_call.1']
    #allocation5 [shape = 'u8[65536]{0}', space=vmem, size = 0x10000, scoped, tag = 'output window, operand 0']
    %28 = vsyncpa [#allocation3], 0
    %29 = vsyncpa [#allocation4], 0
    %s30 = scalar_lea.sflag [#allocation4], 1
    %31 = vsyncpa %s30, 0
    loop: start=0, step=1, limit=4
    $region2: #{tpu_custom_call.1} parent=1 // loop_pre_header
      _
    $region3: #{tpu_custom_call.1} parent=1 // loop_header
      %s33 = sphi 0, %s37
      %p34 = scmp.ge.s32.totalorder %s33, 4
      %s43 = sphi 0, %s45
      %s46 = sphi 0, %s43
      %s47 = sphi 0, %s46
      %s63 = sphi 0, %s47
      %s67 = sphi 0, %s67
      %s69 = sphi 0, %s67
      %s70 = sphi 0, %s69
      %s84 = sphi 0, %s70
      %s88 = sphi 0, %s88
      %s90 = sphi 0, %s88
      %s91 = sphi 0, %s90
      %s105 = sphi 0, %s91
      %s109 = sphi 0, %s109
      %s111 = sphi 0, %s109
      %s112 = sphi 0, %s111
      %s126 = sphi 0, %s112
      %s130 = sphi 0, %s130
      %s132 = sphi 0, %s130
      %s133 = sphi 0, %s132
      %s147 = sphi 0, %s133
      %s151 = sphi 0, %s151
      %s153 = sphi 0, %s151
      %s154 = sphi 0, %s153
      %s168 = sphi 0, %s154
      %s172 = sphi 0, %s172
      %s174 = sphi 0, %s172
      %s175 = sphi 0, %s174
      %s189 = sphi 0, %s175
      %s193 = sphi 0, %s193
      %s195 = sphi 0, %s193
      %s196 = sphi 0, %s195
      %s210 = sphi 0, %s196
      %s214 = sphi 0, %s214
      %s216 = sphi 0, %s214
      %s217 = sphi 0, %s216
      %s231 = sphi 0, %s217
      %s235 = sphi 0, %s235
      %s237 = sphi 0, %s235
      %s238 = sphi 0, %s237
      %s252 = sphi 0, %s238
      %s256 = sphi 0, %s256
      %s258 = sphi 0, %s256
      %s259 = sphi 0, %s258
      %s273 = sphi 0, %s259
      %s277 = sphi 0, %s277
      %s279 = sphi 0, %s277
      %s280 = sphi 0, %s279
      %s294 = sphi 0, %s280
      %s298 = sphi 0, %s298
      %s300 = sphi 0, %s298
      %s301 = sphi 0, %s300
      %s315 = sphi 0, %s301
      %s319 = sphi 0, %s319
      %s321 = sphi 0, %s319
      %s322 = sphi 0, %s321
      %s336 = sphi 0, %s322
      %s340 = sphi 0, %s340
      %s342 = sphi 0, %s340
      %s343 = sphi 0, %s342
      %s357 = sphi 0, %s343
      %s361 = sphi 0, %s361
      %s363 = sphi 0, %s361
      %s364 = sphi 0, %s363
      %s378 = sphi 0, %s364
      %s382 = sphi 0, %s382
      %s384 = sphi 0, %s382
      %s385 = sphi 0, %s384
      %s399 = sphi 0, %s385
      %s403 = sphi 0, %s403
      %s405 = sphi 0, %s403
      %s406 = sphi 0, %s405
      %s420 = sphi 0, %s406
      %s424 = sphi 0, %s424
      %s426 = sphi 0, %s424
      %s427 = sphi 0, %s426
      %s441 = sphi 0, %s427
      %s445 = sphi 0, %s445
      %s447 = sphi 0, %s445
      %s448 = sphi 0, %s447
      %s462 = sphi 0, %s448
      %s466 = sphi 0, %s466
      %s468 = sphi 0, %s466
      %s469 = sphi 0, %s468
      %s483 = sphi 0, %s469
      %s487 = sphi 0, %s487
      %s489 = sphi 0, %s487
      %s490 = sphi 0, %s489
      %s504 = sphi 0, %s490
      %s508 = sphi 0, %s508
      %s510 = sphi 0, %s508
      %s511 = sphi 0, %s510
      %s525 = sphi 0, %s511
      %s531 = sphi 0, %s533
      %s534 = sphi 0, %s531
      %s535 = sphi 0, %s534
      %s551 = sphi 0, %s535
    $region4: #{tpu_custom_call.1} parent=1 // loop_header_branch
      %36 = sbr.rel (%p34) target = $region8
    $region5: #{tpu_custom_call.1} parent=1 // loop_body
      %s38 = ssub.s32 %s33, 1
      %s39 = ssub.s32 %s33, 2
      %s40 = sadd.s32 %s33, 1
      %s41 = ssub.s32 %s33, %s40
      %p42 = scmp.eq.s32.totalorder %s41, 0
      %s44 = sadd.s32 %s43, 1
      %s45 = scalar_select %p42, %s43, %s44
      %p48 = pneg %p42
      %p49 = scmp.eq.s32.totalorder %s33, 1
      %p50 = por %p48, %p49
      %p51 = scmp.ne.s32.totalorder %s43, %s46
      %p52 = scmp.eq.s32.totalorder %s33, 0
      %p53 = por %p51, %p52
      %p54 = scmp.ne.s32.totalorder %s43, %s46
      %p55 = scmp.eq.s32.totalorder %s38, 1
      %p56 = por %p54, %p55
      %p57 = scmp.ne.s32.totalorder %s46, %s47
      %p58 = scmp.eq.s32.totalorder %s38, 0
      %p59 = por %p57, %p58
      %p60 = scmp.ne.s32.totalorder %s46, %s47
      %p61 = scmp.eq.s32.totalorder %s39, 1
      %p62 = por %p60, %p61
      %p64 = scmp.ne.s32.totalorder %s47, %s63
      %p65 = scmp.eq.s32.totalorder %s39, 0
      %p66 = por %p64, %p65
      %s68 = sadd.s32 %s67, 1
      %p71 = scmp.eq.s32.totalorder %s33, 1
      %p72 = scmp.ne.s32.totalorder %s67, %s69
      %p73 = scmp.eq.s32.totalorder %s33, 0
      %p74 = por %p72, %p73
      %p75 = scmp.ne.s32.totalorder %s67, %s69
      %p76 = scmp.eq.s32.totalorder %s38, 1
      %p77 = por %p75, %p76
      %p78 = scmp.ne.s32.totalorder %s69, %s70
      %p79 = scmp.eq.s32.totalorder %s38, 0
      %p80 = por %p78, %p79
      %p81 = scmp.ne.s32.totalorder %s69, %s70
      %p82 = scmp.eq.s32.totalorder %s39, 1
      %p83 = por %p81, %p82
      %p85 = scmp.ne.s32.totalorder %s70, %s84
      %p86 = scmp.eq.s32.totalorder %s39, 0
      %p87 = por %p85, %p86
      %s89 = sadd.s32 %s88, 1
      %p92 = scmp.eq.s32.totalorder %s33, 1
      %p93 = scmp.ne.s32.totalorder %s88, %s90
      %p94 = scmp.eq.s32.totalorder %s33, 0
      %p95 = por %p93, %p94
      %p96 = scmp.ne.s32.totalorder %s88, %s90
      %p97 = scmp.eq.s32.totalorder %s38, 1
      %p98 = por %p96, %p97
      %p99 = scmp.ne.s32.totalorder %s90, %s91
      %p100 = scmp.eq.s32.totalorder %s38, 0
      %p101 = por %p99, %p100
      %p102 = scmp.ne.s32.totalorder %s90, %s91
      %p103 = scmp.eq.s32.totalorder %s39, 1
      %p104 = por %p102, %p103
      %p106 = scmp.ne.s32.totalorder %s91, %s105
      %p107 = scmp.eq.s32.totalorder %s39, 0
      %p108 = por %p106, %p107
      %s110 = sadd.s32 %s109, 1
      %p113 = scmp.eq.s32.totalorder %s33, 1
      %p114 = scmp.ne.s32.totalorder %s109, %s111
      %p115 = scmp.eq.s32.totalorder %s33, 0
      %p116 = por %p114, %p115
      %p117 = scmp.ne.s32.totalorder %s109, %s111
      %p118 = scmp.eq.s32.totalorder %s38, 1
      %p119 = por %p117, %p118
      %p120 = scmp.ne.s32.totalorder %s111, %s112
      %p121 = scmp.eq.s32.totalorder %s38, 0
      %p122 = por %p120, %p121
      %p123 = scmp.ne.s32.totalorder %s111, %s112
      %p124 = scmp.eq.s32.totalorder %s39, 1
      %p125 = por %p123, %p124
      %p127 = scmp.ne.s32.totalorder %s112, %s126
      %p128 = scmp.eq.s32.totalorder %s39, 0
      %p129 = por %p127, %p128
      %s131 = sadd.s32 %s130, 1
      %p134 = scmp.eq.s32.totalorder %s33, 1
      %p135 = scmp.ne.s32.totalorder %s130, %s132
      %p136 = scmp.eq.s32.totalorder %s33, 0
      %p137 = por %p135, %p136
      %p138 = scmp.ne.s32.totalorder %s130, %s132
      %p139 = scmp.eq.s32.totalorder %s38, 1
      %p140 = por %p138, %p139
      %p141 = scmp.ne.s32.totalorder %s132, %s133
      %p142 = scmp.eq.s32.totalorder %s38, 0
      %p143 = por %p141, %p142
      %p144 = scmp.ne.s32.totalorder %s132, %s133
      %p145 = scmp.eq.s32.totalorder %s39, 1
      %p146 = por %p144, %p145
      %p148 = scmp.ne.s32.totalorder %s133, %s147
      %p149 = scmp.eq.s32.totalorder %s39, 0
      %p150 = por %p148, %p149
      %s152 = sadd.s32 %s151, 1
      %p155 = scmp.eq.s32.totalorder %s33, 1
      %p156 = scmp.ne.s32.totalorder %s151, %s153
      %p157 = scmp.eq.s32.totalorder %s33, 0
      %p158 = por %p156, %p157
      %p159 = scmp.ne.s32.totalorder %s151, %s153
      %p160 = scmp.eq.s32.totalorder %s38, 1
      %p161 = por %p159, %p160
      %p162 = scmp.ne.s32.totalorder %s153, %s154
      %p163 = scmp.eq.s32.totalorder %s38, 0
      %p164 = por %p162, %p163
      %p165 = scmp.ne.s32.totalorder %s153, %s154
      %p166 = scmp.eq.s32.totalorder %s39, 1
      %p167 = por %p165, %p166
      %p169 = scmp.ne.s32.totalorder %s154, %s168
      %p170 = scmp.eq.s32.totalorder %s39, 0
      %p171 = por %p169, %p170
      %s173 = sadd.s32 %s172, 1
      %p176 = scmp.eq.s32.totalorder %s33, 1
      %p177 = scmp.ne.s32.totalorder %s172, %s174
      %p178 = scmp.eq.s32.totalorder %s33, 0
      %p179 = por %p177, %p178
      %p180 = scmp.ne.s32.totalorder %s172, %s174
      %p181 = scmp.eq.s32.totalorder %s38, 1
      %p182 = por %p180, %p181
      %p183 = scmp.ne.s32.totalorder %s174, %s175
      %p184 = scmp.eq.s32.totalorder %s38, 0
      %p185 = por %p183, %p184
      %p186 = scmp.ne.s32.totalorder %s174, %s175
      %p187 = scmp.eq.s32.totalorder %s39, 1
      %p188 = por %p186, %p187
      %p190 = scmp.ne.s32.totalorder %s175, %s189
      %p191 = scmp.eq.s32.totalorder %s39, 0
      %p192 = por %p190, %p191
      %s194 = sadd.s32 %s193, 1
      %p197 = scmp.eq.s32.totalorder %s33, 1
      %p198 = scmp.ne.s32.totalorder %s193, %s195
      %p199 = scmp.eq.s32.totalorder %s33, 0
      %p200 = por %p198, %p199
      %p201 = scmp.ne.s32.totalorder %s193, %s195
      %p202 = scmp.eq.s32.totalorder %s38, 1
      %p203 = por %p201, %p202
      %p204 = scmp.ne.s32.totalorder %s195, %s196
      %p205 = scmp.eq.s32.totalorder %s38, 0
      %p206 = por %p204, %p205
      %p207 = scmp.ne.s32.totalorder %s195, %s196
      %p208 = scmp.eq.s32.totalorder %s39, 1
      %p209 = por %p207, %p208
      %p211 = scmp.ne.s32.totalorder %s196, %s210
      %p212 = scmp.eq.s32.totalorder %s39, 0
      %p213 = por %p211, %p212
      %s215 = sadd.s32 %s214, 1
      %p218 = scmp.eq.s32.totalorder %s33, 1
      %p219 = scmp.ne.s32.totalorder %s214, %s216
      %p220 = scmp.eq.s32.totalorder %s33, 0
      %p221 = por %p219, %p220
      %p222 = scmp.ne.s32.totalorder %s214, %s216
      %p223 = scmp.eq.s32.totalorder %s38, 1
      %p224 = por %p222, %p223
      %p225 = scmp.ne.s32.totalorder %s216, %s217
      %p226 = scmp.eq.s32.totalorder %s38, 0
      %p227 = por %p225, %p226
      %p228 = scmp.ne.s32.totalorder %s216, %s217
      %p229 = scmp.eq.s32.totalorder %s39, 1
      %p230 = por %p228, %p229
      %p232 = scmp.ne.s32.totalorder %s217, %s231
      %p233 = scmp.eq.s32.totalorder %s39, 0
      %p234 = por %p232, %p233
      %s236 = sadd.s32 %s235, 1
      %p239 = scmp.eq.s32.totalorder %s33, 1
      %p240 = scmp.ne.s32.totalorder %s235, %s237
      %p241 = scmp.eq.s32.totalorder %s33, 0
      %p242 = por %p240, %p241
      %p243 = scmp.ne.s32.totalorder %s235, %s237
      %p244 = scmp.eq.s32.totalorder %s38, 1
      %p245 = por %p243, %p244
      %p246 = scmp.ne.s32.totalorder %s237, %s238
      %p247 = scmp.eq.s32.totalorder %s38, 0
      %p248 = por %p246, %p247
      %p249 = scmp.ne.s32.totalorder %s237, %s238
      %p250 = scmp.eq.s32.totalorder %s39, 1
      %p251 = por %p249, %p250
      %p253 = scmp.ne.s32.totalorder %s238, %s252
      %p254 = scmp.eq.s32.totalorder %s39, 0
      %p255 = por %p253, %p254
      %s257 = sadd.s32 %s256, 1
      %p260 = scmp.eq.s32.totalorder %s33, 1
      %p261 = scmp.ne.s32.totalorder %s256, %s258
      %p262 = scmp.eq.s32.totalorder %s33, 0
      %p263 = por %p261, %p262
      %p264 = scmp.ne.s32.totalorder %s256, %s258
      %p265 = scmp.eq.s32.totalorder %s38, 1
      %p266 = por %p264, %p265
      %p267 = scmp.ne.s32.totalorder %s258, %s259
      %p268 = scmp.eq.s32.totalorder %s38, 0
      %p269 = por %p267, %p268
      %p270 = scmp.ne.s32.totalorder %s258, %s259
      %p271 = scmp.eq.s32.totalorder %s39, 1
      %p272 = por %p270, %p271
      %p274 = scmp.ne.s32.totalorder %s259, %s273
      %p275 = scmp.eq.s32.totalorder %s39, 0
      %p276 = por %p274, %p275
      %s278 = sadd.s32 %s277, 1
      %p281 = scmp.eq.s32.totalorder %s33, 1
      %p282 = scmp.ne.s32.totalorder %s277, %s279
      %p283 = scmp.eq.s32.totalorder %s33, 0
      %p284 = por %p282, %p283
      %p285 = scmp.ne.s32.totalorder %s277, %s279
      %p286 = scmp.eq.s32.totalorder %s38, 1
      %p287 = por %p285, %p286
      %p288 = scmp.ne.s32.totalorder %s279, %s280
      %p289 = scmp.eq.s32.totalorder %s38, 0
      %p290 = por %p288, %p289
      %p291 = scmp.ne.s32.totalorder %s279, %s280
      %p292 = scmp.eq.s32.totalorder %s39, 1
      %p293 = por %p291, %p292
      %p295 = scmp.ne.s32.totalorder %s280, %s294
      %p296 = scmp.eq.s32.totalorder %s39, 0
      %p297 = por %p295, %p296
      %s299 = sadd.s32 %s298, 1
      %p302 = scmp.eq.s32.totalorder %s33, 1
      %p303 = scmp.ne.s32.totalorder %s298, %s300
      %p304 = scmp.eq.s32.totalorder %s33, 0
      %p305 = por %p303, %p304
      %p306 = scmp.ne.s32.totalorder %s298, %s300
      %p307 = scmp.eq.s32.totalorder %s38, 1
      %p308 = por %p306, %p307
      %p309 = scmp.ne.s32.totalorder %s300, %s301
      %p310 = scmp.eq.s32.totalorder %s38, 0
      %p311 = por %p309, %p310
      %p312 = scmp.ne.s32.totalorder %s300, %s301
      %p313 = scmp.eq.s32.totalorder %s39, 1
      %p314 = por %p312, %p313
      %p316 = scmp.ne.s32.totalorder %s301, %s315
      %p317 = scmp.eq.s32.totalorder %s39, 0
      %p318 = por %p316, %p317
      %s320 = sadd.s32 %s319, 1
      %p323 = scmp.eq.s32.totalorder %s33, 1
      %p324 = scmp.ne.s32.totalorder %s319, %s321
      %p325 = scmp.eq.s32.totalorder %s33, 0
      %p326 = por %p324, %p325
      %p327 = scmp.ne.s32.totalorder %s319, %s321
      %p328 = scmp.eq.s32.totalorder %s38, 1
      %p329 = por %p327, %p328
      %p330 = scmp.ne.s32.totalorder %s321, %s322
      %p331 = scmp.eq.s32.totalorder %s38, 0
      %p332 = por %p330, %p331
      %p333 = scmp.ne.s32.totalorder %s321, %s322
      %p334 = scmp.eq.s32.totalorder %s39, 1
      %p335 = por %p333, %p334
      %p337 = scmp.ne.s32.totalorder %s322, %s336
      %p338 = scmp.eq.s32.totalorder %s39, 0
      %p339 = por %p337, %p338
      %s341 = sadd.s32 %s340, 1
      %p344 = scmp.eq.s32.totalorder %s33, 1
      %p345 = scmp.ne.s32.totalorder %s340, %s342
      %p346 = scmp.eq.s32.totalorder %s33, 0
      %p347 = por %p345, %p346
      %p348 = scmp.ne.s32.totalorder %s340, %s342
      %p349 = scmp.eq.s32.totalorder %s38, 1
      %p350 = por %p348, %p349
      %p351 = scmp.ne.s32.totalorder %s342, %s343
      %p352 = scmp.eq.s32.totalorder %s38, 0
      %p353 = por %p351, %p352
      %p354 = scmp.ne.s32.totalorder %s342, %s343
      %p355 = scmp.eq.s32.totalorder %s39, 1
      %p356 = por %p354, %p355
      %p358 = scmp.ne.s32.totalorder %s343, %s357
      %p359 = scmp.eq.s32.totalorder %s39, 0
      %p360 = por %p358, %p359
      %s362 = sadd.s32 %s361, 1
      %p365 = scmp.eq.s32.totalorder %s33, 1
      %p366 = scmp.ne.s32.totalorder %s361, %s363
      %p367 = scmp.eq.s32.totalorder %s33, 0
      %p368 = por %p366, %p367
      %p369 = scmp.ne.s32.totalorder %s361, %s363
      %p370 = scmp.eq.s32.totalorder %s38, 1
      %p371 = por %p369, %p370
      %p372 = scmp.ne.s32.totalorder %s363, %s364
      %p373 = scmp.eq.s32.totalorder %s38, 0
      %p374 = por %p372, %p373
      %p375 = scmp.ne.s32.totalorder %s363, %s364
      %p376 = scmp.eq.s32.totalorder %s39, 1
      %p377 = por %p375, %p376
      %p379 = scmp.ne.s32.totalorder %s364, %s378
      %p380 = scmp.eq.s32.totalorder %s39, 0
      %p381 = por %p379, %p380
      %s383 = sadd.s32 %s382, 1
      %p386 = scmp.eq.s32.totalorder %s33, 1
      %p387 = scmp.ne.s32.totalorder %s382, %s384
      %p388 = scmp.eq.s32.totalorder %s33, 0
      %p389 = por %p387, %p388
      %p390 = scmp.ne.s32.totalorder %s382, %s384
      %p391 = scmp.eq.s32.totalorder %s38, 1
      %p392 = por %p390, %p391
      %p393 = scmp.ne.s32.totalorder %s384, %s385
      %p394 = scmp.eq.s32.totalorder %s38, 0
      %p395 = por %p393, %p394
      %p396 = scmp.ne.s32.totalorder %s384, %s385
      %p397 = scmp.eq.s32.totalorder %s39, 1
      %p398 = por %p396, %p397
      %p400 = scmp.ne.s32.totalorder %s385, %s399
      %p401 = scmp.eq.s32.totalorder %s39, 0
      %p402 = por %p400, %p401
      %s404 = sadd.s32 %s403, 1
      %p407 = scmp.eq.s32.totalorder %s33, 1
      %p408 = scmp.ne.s32.totalorder %s403, %s405
      %p409 = scmp.eq.s32.totalorder %s33, 0
      %p410 = por %p408, %p409
      %p411 = scmp.ne.s32.totalorder %s403, %s405
      %p412 = scmp.eq.s32.totalorder %s38, 1
      %p413 = por %p411, %p412
      %p414 = scmp.ne.s32.totalorder %s405, %s406
      %p415 = scmp.eq.s32.totalorder %s38, 0
      %p416 = por %p414, %p415
      %p417 = scmp.ne.s32.totalorder %s405, %s406
      %p418 = scmp.eq.s32.totalorder %s39, 1
      %p419 = por %p417, %p418
      %p421 = scmp.ne.s32.totalorder %s406, %s420
      %p422 = scmp.eq.s32.totalorder %s39, 0
      %p423 = por %p421, %p422
      %s425 = sadd.s32 %s424, 1
      %p428 = scmp.eq.s32.totalorder %s33, 1
      %p429 = scmp.ne.s32.totalorder %s424, %s426
      %p430 = scmp.eq.s32.totalorder %s33, 0
      %p431 = por %p429, %p430
      %p432 = scmp.ne.s32.totalorder %s424, %s426
      %p433 = scmp.eq.s32.totalorder %s38, 1
      %p434 = por %p432, %p433
      %p435 = scmp.ne.s32.totalorder %s426, %s427
      %p436 = scmp.eq.s32.totalorder %s38, 0
      %p437 = por %p435, %p436
      %p438 = scmp.ne.s32.totalorder %s426, %s427
      %p439 = scmp.eq.s32.totalorder %s39, 1
      %p440 = por %p438, %p439
      %p442 = scmp.ne.s32.totalorder %s427, %s441
      %p443 = scmp.eq.s32.totalorder %s39, 0
      %p444 = por %p442, %p443
      %s446 = sadd.s32 %s445, 1
      %p449 = scmp.eq.s32.totalorder %s33, 1
      %p450 = scmp.ne.s32.totalorder %s445, %s447
      %p451 = scmp.eq.s32.totalorder %s33, 0
      %p452 = por %p450, %p451
      %p453 = scmp.ne.s32.totalorder %s445, %s447
      %p454 = scmp.eq.s32.totalorder %s38, 1
      %p455 = por %p453, %p454
      %p456 = scmp.ne.s32.totalorder %s447, %s448
      %p457 = scmp.eq.s32.totalorder %s38, 0
      %p458 = por %p456, %p457
      %p459 = scmp.ne.s32.totalorder %s447, %s448
      %p460 = scmp.eq.s32.totalorder %s39, 1
      %p461 = por %p459, %p460
      %p463 = scmp.ne.s32.totalorder %s448, %s462
      %p464 = scmp.eq.s32.totalorder %s39, 0
      %p465 = por %p463, %p464
      %s467 = sadd.s32 %s466, 1
      %p470 = scmp.eq.s32.totalorder %s33, 1
      %p471 = scmp.ne.s32.totalorder %s466, %s468
      %p472 = scmp.eq.s32.totalorder %s33, 0
      %p473 = por %p471, %p472
      %p474 = scmp.ne.s32.totalorder %s466, %s468
      %p475 = scmp.eq.s32.totalorder %s38, 1
      %p476 = por %p474, %p475
      %p477 = scmp.ne.s32.totalorder %s468, %s469
      %p478 = scmp.eq.s32.totalorder %s38, 0
      %p479 = por %p477, %p478
      %p480 = scmp.ne.s32.totalorder %s468, %s469
      %p481 = scmp.eq.s32.totalorder %s39, 1
      %p482 = por %p480, %p481
      %p484 = scmp.ne.s32.totalorder %s469, %s483
      %p485 = scmp.eq.s32.totalorder %s39, 0
      %p486 = por %p484, %p485
      %s488 = sadd.s32 %s487, 1
      %p491 = scmp.eq.s32.totalorder %s33, 1
      %p492 = scmp.ne.s32.totalorder %s487, %s489
      %p493 = scmp.eq.s32.totalorder %s33, 0
      %p494 = por %p492, %p493
      %p495 = scmp.ne.s32.totalorder %s487, %s489
      %p496 = scmp.eq.s32.totalorder %s38, 1
      %p497 = por %p495, %p496
      %p498 = scmp.ne.s32.totalorder %s489, %s490
      %p499 = scmp.eq.s32.totalorder %s38, 0
      %p500 = por %p498, %p499
      %p501 = scmp.ne.s32.totalorder %s489, %s490
      %p502 = scmp.eq.s32.totalorder %s39, 1
      %p503 = por %p501, %p502
      %p505 = scmp.ne.s32.totalorder %s490, %s504
      %p506 = scmp.eq.s32.totalorder %s39, 0
      %p507 = por %p505, %p506
      %s509 = sadd.s32 %s508, 1
      %p512 = scmp.eq.s32.totalorder %s33, 1
      %p513 = scmp.ne.s32.totalorder %s508, %s510
      %p514 = scmp.eq.s32.totalorder %s33, 0
      %p515 = por %p513, %p514
      %p516 = scmp.ne.s32.totalorder %s508, %s510
      %p517 = scmp.eq.s32.totalorder %s38, 1
      %p518 = por %p516, %p517
      %p519 = scmp.ne.s32.totalorder %s510, %s511
      %p520 = scmp.eq.s32.totalorder %s38, 0
      %p521 = por %p519, %p520
      %p522 = scmp.ne.s32.totalorder %s510, %s511
      %p523 = scmp.eq.s32.totalorder %s39, 1
      %p524 = por %p522, %p523
      %p526 = scmp.ne.s32.totalorder %s511, %s525
      %p527 = scmp.eq.s32.totalorder %s39, 0
      %p528 = por %p526, %p527
      %s529 = ssub.s32 %s33, %s40
      %p530 = scmp.eq.s32.totalorder %s529, 0
      %s532 = sadd.s32 %s531, 1
      %s533 = scalar_select %p530, %s531, %s532
      %p536 = pneg %p530
      %p537 = scmp.eq.s32.totalorder %s33, 1
      %p538 = por %p536, %p537
      %p539 = scmp.ne.s32.totalorder %s531, %s534
      %p540 = scmp.eq.s32.totalorder %s33, 0
      %p541 = por %p539, %p540
      %p542 = scmp.ne.s32.totalorder %s531, %s534
      %p543 = scmp.eq.s32.totalorder %s38, 1
      %p544 = por %p542, %p543
      %p545 = scmp.ne.s32.totalorder %s534, %s535
      %p546 = scmp.eq.s32.totalorder %s38, 0
      %p547 = por %p545, %p546
      %p548 = scmp.ne.s32.totalorder %s534, %s535
      %p549 = scmp.eq.s32.totalorder %s39, 1
      %p550 = por %p548, %p549
      %p552 = scmp.ne.s32.totalorder %s535, %s551
      %p553 = scmp.eq.s32.totalorder %s39, 0
      %p554 = por %p552, %p553
      %p555 = scmp.le.s32.totalorder 1, %s33
      %p556 = scmp.lt.s32.totalorder %s33, 3
      %p557 = pnand %p555, %p556
      %p558 = pneg %p557
      // Predicated region
      $region9: #{tpu_custom_call.1} parent=5 // pred_check
        _
      $region10: #{tpu_custom_call.1} parent=5 // pred_check_branch
        %560 = sbr.rel (%p557) target = $region12
      $region11: #{tpu_custom_call.1} parent=5 // pred_region
        %s561 = ssub.s32 %s33, 1
        // Predicated region
        $region13: #{tpu_custom_call.1} parent=11 // pred_check
          %p562 = pneg %p80
        $region14: #{tpu_custom_call.1} parent=11 // pred_check_branch
          %564 = sbr.rel (%p562) target = $region16
        $region15: #{tpu_custom_call.1} parent=11 // pred_region
          _
        $region16: #{tpu_custom_call.1} parent=11 // pred_fallthru
          _
        // Predicated region
        $region17: #{tpu_custom_call.1} parent=11 // pred_check
          %p565 = pneg %p101
        $region18: #{tpu_custom_call.1} parent=11 // pred_check_branch
          %567 = sbr.rel (%p565) target = $region20
        $region19: #{tpu_custom_call.1} parent=11 // pred_region
          _
        $region20: #{tpu_custom_call.1} parent=11 // pred_fallthru
          _
        // Predicated region
        $region21: #{tpu_custom_call.1} parent=11 // pred_check
          %p568 = pneg %p122
        $region22: #{tpu_custom_call.1} parent=11 // pred_check_branch
          %570 = sbr.rel (%p568) target = $region24
        $region23: #{tpu_custom_call.1} parent=11 // pred_region
          _
        $region24: #{tpu_custom_call.1} parent=11 // pred_fallthru
          _
        // Predicated region
        $region25: #{tpu_custom_call.1} parent=11 // pred_check
          %p571 = pneg %p143
        $region26: #{tpu_custom_call.1} parent=11 // pred_check_branch
          %573 = sbr.rel (%p571) target = $region28
        $region27: #{tpu_custom_call.1} parent=11 // pred_region
          _
        $region28: #{tpu_custom_call.1} parent=11 // pred_fallthru
          _
        // Predicated region
        $region29: #{tpu_custom_call.1} parent=11 // pred_check
          %p574 = pneg %p164
        $region30: #{tpu_custom_call.1} parent=11 // pred_check_branch
          %576 = sbr.rel (%p574) target = $region32
        $region31: #{tpu_custom_call.1} parent=11 // pred_region
          _
        $region32: #{tpu_custom_call.1} parent=11 // pred_fallthru
          _
        // Predicated region
        $region33: #{tpu_custom_call.1} parent=11 // pred_check
          %p577 = pneg %p185
        $region34: #{tpu_custom_call.1} parent=11 // pred_check_branch
          %579 = sbr.rel (%p577) target = $region36
        $region35: #{tpu_custom_call.1} parent=11 // pred_region
          _
        $region36: #{tpu_custom_call.1} parent=11 // pred_fallthru
          _
        // Predicated region
        $region37: #{tpu_custom_call.1} parent=11 // pred_check
          %p580 = pneg %p206
        $region38: #{tpu_custom_call.1} parent=11 // pred_check_branch
          %582 = sbr.rel (%p580) target = $region40
        $region39: #{tpu_custom_call.1} parent=11 // pred_region
          _
        $region40: #{tpu_custom_call.1} parent=11 // pred_fallthru
          _
        // Predicated region
        $region41: #{tpu_custom_call.1} parent=11 // pred_check
          %p583 = pneg %p227
        $region42: #{tpu_custom_call.1} parent=11 // pred_check_branch
          %585 = sbr.rel (%p583) target = $region44
        $region43: #{tpu_custom_call.1} parent=11 // pred_region
          _
        $region44: #{tpu_custom_call.1} parent=11 // pred_fallthru
          _
        // Predicated region
        $region45: #{tpu_custom_call.1} parent=11 // pred_check
          %p586 = pneg %p248
        $region46: #{tpu_custom_call.1} parent=11 // pred_check_branch
          %588 = sbr.rel (%p586) target = $region48
        $region47: #{tpu_custom_call.1} parent=11 // pred_region
          _
        $region48: #{tpu_custom_call.1} parent=11 // pred_fallthru
          _
        // Predicated region
        $region49: #{tpu_custom_call.1} parent=11 // pred_check
          %p589 = pneg %p269
        $region50: #{tpu_custom_call.1} parent=11 // pred_check_branch
          %591 = sbr.rel (%p589) target = $region52
        $region51: #{tpu_custom_call.1} parent=11 // pred_region
          _
        $region52: #{tpu_custom_call.1} parent=11 // pred_fallthru
          _
        // Predicated region
        $region53: #{tpu_custom_call.1} parent=11 // pred_check
          %p592 = pneg %p290
        $region54: #{tpu_custom_call.1} parent=11 // pred_check_branch
          %594 = sbr.rel (%p592) target = $region56
        $region55: #{tpu_custom_call.1} parent=11 // pred_region
          _
        $region56: #{tpu_custom_call.1} parent=11 // pred_fallthru
          _
        // Predicated region
        $region57: #{tpu_custom_call.1} parent=11 // pred_check
          %p595 = pneg %p311
        $region58: #{tpu_custom_call.1} parent=11 // pred_check_branch
          %597 = sbr.rel (%p595) target = $region60
        $region59: #{tpu_custom_call.1} parent=11 // pred_region
          _
        $region60: #{tpu_custom_call.1} parent=11 // pred_fallthru
          _
        // Predicated region
        $region61: #{tpu_custom_call.1} parent=11 // pred_check
          %p598 = pneg %p332
        $region62: #{tpu_custom_call.1} parent=11 // pred_check_branch
          %600 = sbr.rel (%p598) target = $region64
        $region63: #{tpu_custom_call.1} parent=11 // pred_region
          _
        $region64: #{tpu_custom_call.1} parent=11 // pred_fallthru
          _
        // Predicated region
        $region65: #{tpu_custom_call.1} parent=11 // pred_check
          %p601 = pneg %p353
        $region66: #{tpu_custom_call.1} parent=11 // pred_check_branch
          %603 = sbr.rel (%p601) target = $region68
        $region67: #{tpu_custom_call.1} parent=11 // pred_region
          _
        $region68: #{tpu_custom_call.1} parent=11 // pred_fallthru
          _
        // Predicated region
        $region69: #{tpu_custom_call.1} parent=11 // pred_check
          %p604 = pneg %p374
        $region70: #{tpu_custom_call.1} parent=11 // pred_check_branch
          %606 = sbr.rel (%p604) target = $region72
        $region71: #{tpu_custom_call.1} parent=11 // pred_region
          %608 = vsyncadd [#allocation3], 0
          %s609 = sshll.u32 %s15, 4
          %s610 = int_to_ptr.hbm [resolvable:$true] %s609
          %s611 = sshll.u32 [#allocation2], 4
          %s612 = int_to_ptr.vmem [resolvable:$true] %s611
          %617 = dma.hbm_to_vmem [thread:$0]  %s610, 3072, %s612, [#allocation3], 128, 128, 8
        $region72: #{tpu_custom_call.1} parent=11 // pred_fallthru
          _
        // Predicated region
        $region73: #{tpu_custom_call.1} parent=11 // pred_check
          %p618 = pneg %p395
        $region74: #{tpu_custom_call.1} parent=11 // pred_check_branch
          %620 = sbr.rel (%p618) target = $region76
        $region75: #{tpu_custom_call.1} parent=11 // pred_region
          _
        $region76: #{tpu_custom_call.1} parent=11 // pred_fallthru
          _
        // Predicated region
        $region77: #{tpu_custom_call.1} parent=11 // pred_check
          %p621 = pneg %p416
        $region78: #{tpu_custom_call.1} parent=11 // pred_check_branch
          %623 = sbr.rel (%p621) target = $region80
        $region79: #{tpu_custom_call.1} parent=11 // pred_region
          _
        $region80: #{tpu_custom_call.1} parent=11 // pred_fallthru
          _
        // Predicated region
        $region81: #{tpu_custom_call.1} parent=11 // pred_check
          %p624 = pneg %p437
        $region82: #{tpu_custom_call.1} parent=11 // pred_check_branch
          %626 = sbr.rel (%p624) target = $region84
        $region83: #{tpu_custom_call.1} parent=11 // pred_region
          _
        $region84: #{tpu_custom_call.1} parent=11 // pred_fallthru
          _
        // Predicated region
        $region85: #{tpu_custom_call.1} parent=11 // pred_check
          %p627 = pneg %p458
        $region86: #{tpu_custom_call.1} parent=11 // pred_check_branch
          %629 = sbr.rel (%p627) target = $region88
        $region87: #{tpu_custom_call.1} parent=11 // pred_region
          _
        $region88: #{tpu_custom_call.1} parent=11 // pred_fallthru
          _
        // Predicated region
        $region89: #{tpu_custom_call.1} parent=11 // pred_check
          %p630 = pneg %p479
        $region90: #{tpu_custom_call.1} parent=11 // pred_check_branch
          %632 = sbr.rel (%p630) target = $region92
        $region91: #{tpu_custom_call.1} parent=11 // pred_region
          _
        $region92: #{tpu_custom_call.1} parent=11 // pred_fallthru
          _
        // Predicated region
        $region93: #{tpu_custom_call.1} parent=11 // pred_check
          %p633 = pneg %p500
        $region94: #{tpu_custom_call.1} parent=11 // pred_check_branch
          %635 = sbr.rel (%p633) target = $region96
        $region95: #{tpu_custom_call.1} parent=11 // pred_region
          _
        $region96: #{tpu_custom_call.1} parent=11 // pred_fallthru
          _
        // Predicated region
        $region97: #{tpu_custom_call.1} parent=11 // pred_check
          %p636 = pneg %p521
        $region98: #{tpu_custom_call.1} parent=11 // pred_check_branch
          %638 = sbr.rel (%p636) target = $region100
        $region99: #{tpu_custom_call.1} parent=11 // pred_region
          _
        $region100: #{tpu_custom_call.1} parent=11 // pred_fallthru
          _
      $region12: #{tpu_custom_call.1} parent=5 // pred_fallthru
        _
      %p639 = scmp.lt.s32.totalorder %s33, 2
      // Predicated region
      $region101: #{tpu_custom_call.1} parent=5 // pred_check
        %p640 = pneg %p639
      $region102: #{tpu_custom_call.1} parent=5 // pred_check_branch
        %642 = sbr.rel (%p640) target = $region104
      $region103: #{tpu_custom_call.1} parent=5 // pred_region
        // Predicated region
        $region105: #{tpu_custom_call.1} parent=103 // pred_check
          %p643 = pneg %p53
        $region106: #{tpu_custom_call.1} parent=103 // pred_check_branch
          %645 = sbr.rel (%p643) target = $region108
        $region107: #{tpu_custom_call.1} parent=103 // pred_region
          %s646 = smul.u32 8, %s33
          %p647 = scmp.lt.s32.totalorder %s646, 15
          %s648 = scalar_select %p647, %s646, 15
          %s649 = smul.addr %s648, 8
          %s650 = scalar_lea.vmem %s0, %s649
          %s651 = smul.u32 8, %s33
        $region108: #{tpu_custom_call.1} parent=103 // pred_fallthru
          _
      $region104: #{tpu_custom_call.1} parent=5 // pred_fallthru
        _
      %p652 = scmp.le.s32.totalorder 1, %s33
      %p653 = scmp.lt.s32.totalorder %s33, 3
      %p654 = pnand %p652, %p653
      %p655 = pneg %p654
      // Predicated region
      $region109: #{tpu_custom_call.1} parent=5 // pred_check
        _
      $region110: #{tpu_custom_call.1} parent=5 // pred_check_branch
        %657 = sbr.rel (%p654) target = $region112
      $region111: #{tpu_custom_call.1} parent=5 // pred_region
        %s658 = ssub.s32 %s33, 1
        // Predicated region
        $region113: #{tpu_custom_call.1} parent=111 // pred_check
          %p659 = pneg %p374
        $region114: #{tpu_custom_call.1} parent=111 // pred_check_branch
          %661 = sbr.rel (%p659) target = $region116
        $region115: #{tpu_custom_call.1} parent=111 // pred_region
          %663 = dma.done [#allocation3], 3072
        $region116: #{tpu_custom_call.1} parent=111 // pred_fallthru
          _
        %s664 = smul.u32 8, %s38
        %p665 = scmp.lt.s32.totalorder %s664, 15
        %s666 = scalar_select %p665, %s664, 15
        %s667 = smul.addr %s666, 8
        %s668 = scalar_lea.vmem %s0, %s667
        %p669 = pneg %p59
        %p670 = pneg %p56
        %p671 = pneg %p80
        %p672 = pneg %p77
        %p673 = pneg %p101
        %p674 = pneg %p98
        %p675 = pneg %p122
        %p676 = pneg %p119
        %p677 = pneg %p143
        %p678 = pneg %p140
        %p679 = pneg %p164
        %p680 = pneg %p161
        %p681 = pneg %p185
        %p682 = pneg %p182
        %p683 = pneg %p206
        %p684 = pneg %p203
        %p685 = pneg %p227
        %p686 = pneg %p224
        %p687 = pneg %p248
        %p688 = pneg %p245
        %p689 = pneg %p269
        %p690 = pneg %p266
        %p691 = pneg %p290
        %p692 = pneg %p287
        %p693 = pneg %p311
        %p694 = pneg %p308
        %p695 = pneg %p332
        %p696 = pneg %p329
        %p697 = pneg %p353
        %p698 = pneg %p350
        %p699 = pneg %p374
        %p700 = pneg %p371
        %p701 = pneg %p395
        %p702 = pneg %p392
        %p703 = pneg %p416
        %p704 = pneg %p413
        %p705 = pneg %p437
        %p706 = pneg %p434
        %p707 = pneg %p458
        %p708 = pneg %p455
        %p709 = pneg %p479
        %p710 = pneg %p476
        %p711 = pneg %p500
        %p712 = pneg %p497
        %p713 = pneg %p521
        %p714 = pneg %p518
        %p715 = pneg %p547
        %p716 = pneg %p544
        %s717 = sand.u32 %s534, 1
        %s718 = scalar_lea.sflag [#allocation4], %s717
        %s719 = sand.u32 %s534, 1
        %s720 = smul.addr %s719, 64
        %s721 = scalar_lea.vmem [#allocation5], %s720
        %s722 = smul.u32 8, %s38
        %p723 = scmp.lt.s32.totalorder %s722, 15
        %s724 = scalar_select %p723, %s722, 15
        %s725 = smul.addr %s724, 8
        %s726 = scalar_lea.vmem %s0, %s725
        %s727 = smul.u32 8, %s38
        %s728 = smul.u32 8, %s38
        %v729 = vlaneseq
        %v730 = vshrl.u32 %v729, 7
        %v731 = vadd.s32 %v730, 8
        %v732 = vadd.s32 %v730, 16
        %v733 = vadd.s32 %v730, 24
        %v734 = vadd.s32 %v730, 32
        %v735 = vadd.s32 %v730, 40
        %v736 = vadd.s32 %v730, 48
        %v737 = vadd.s32 %v730, 56
        %vm738 = vcmp.lt.s32.totalorder %v730, 0
        %v739 = vsub.s32 0, %v730
        %v740 = vsel %vm738, %v739, %v730
        %v741 = vshrl.u32 %v740, 4
        %v742 = vand.u32 %v740, 15
        %v743 = vsub.s32 0, %v742
        %v744 = vsel %vm738, %v743, %v742
        %vm745 = vcmp.lt.s32.totalorder %v731, 0
        %v746 = vsub.s32 0, %v731
        %v747 = vsel %vm745, %v746, %v731
        %v748 = vshrl.u32 %v747, 4
        %v749 = vand.u32 %v747, 15
        %v750 = vsub.s32 0, %v749
        %v751 = vsel %vm745, %v750, %v749
        %vm752 = vcmp.lt.s32.totalorder %v732, 0
        %v753 = vsub.s32 0, %v732
        %v754 = vsel %vm752, %v753, %v732
        %v755 = vshrl.u32 %v754, 4
        %v756 = vand.u32 %v754, 15
        %v757 = vsub.s32 0, %v756
        %v758 = vsel %vm752, %v757, %v756
        %vm759 = vcmp.lt.s32.totalorder %v733, 0
        %v760 = vsub.s32 0, %v733
        %v761 = vsel %vm759, %v760, %v733
        %v762 = vshrl.u32 %v761, 4
        %v763 = vand.u32 %v761, 15
        %v764 = vsub.s32 0, %v763
        %v765 = vsel %vm759, %v764, %v763
        %vm766 = vcmp.lt.s32.totalorder %v734, 0
        %v767 = vsub.s32 0, %v734
        %v768 = vsel %vm766, %v767, %v734
        %v769 = vshrl.u32 %v768, 4
        %v770 = vand.u32 %v768, 15
        %v771 = vsub.s32 0, %v770
        %v772 = vsel %vm766, %v771, %v770
        %vm773 = vcmp.lt.s32.totalorder %v735, 0
        %v774 = vsub.s32 0, %v735
        %v775 = vsel %vm773, %v774, %v735
        %v776 = vshrl.u32 %v775, 4
        %v777 = vand.u32 %v775, 15
        %v778 = vsub.s32 0, %v777
        %v779 = vsel %vm773, %v778, %v777
        %vm780 = vcmp.lt.s32.totalorder %v736, 0
        %v781 = vsub.s32 0, %v736
        %v782 = vsel %vm780, %v781, %v736
        %v783 = vshrl.u32 %v782, 4
        %v784 = vand.u32 %v782, 15
        %v785 = vsub.s32 0, %v784
        %v786 = vsel %vm780, %v785, %v784
        %vm787 = vcmp.lt.s32.totalorder %v737, 0
        %v788 = vsub.s32 0, %v737
        %v789 = vsel %vm787, %v788, %v737
        %v790 = vshrl.u32 %v789, 4
        %v791 = vand.u32 %v789, 15
        %v792 = vsub.s32 0, %v791
        %v793 = vsel %vm787, %v792, %v791
        %vm794 = vcmp.ne.s32.totalorder %v744, 0
        %vm795 = vcmp.ne.s32.totalorder %v751, 0
        %vm796 = vcmp.ne.s32.totalorder %v758, 0
        %vm797 = vcmp.ne.s32.totalorder %v765, 0
        %vm798 = vcmp.ne.s32.totalorder %v772, 0
        %vm799 = vcmp.ne.s32.totalorder %v779, 0
        %vm800 = vcmp.ne.s32.totalorder %v786, 0
        %vm801 = vcmp.ne.s32.totalorder %v793, 0
        %vm802 = vcmp.lt.s32.totalorder %v744, 0
        %vm803 = vcmp.lt.s32.totalorder %v751, 0
        %vm804 = vcmp.lt.s32.totalorder %v758, 0
        %vm805 = vcmp.lt.s32.totalorder %v765, 0
        %vm806 = vcmp.lt.s32.totalorder %v772, 0
        %vm807 = vcmp.lt.s32.totalorder %v779, 0
        %vm808 = vcmp.lt.s32.totalorder %v786, 0
        %vm809 = vcmp.lt.s32.totalorder %v793, 0
        %vm810 = vmand %vm802, %vm794
        %vm811 = vmand %vm803, %vm795
        %vm812 = vmand %vm804, %vm796
        %vm813 = vmand %vm805, %vm797
        %vm814 = vmand %vm806, %vm798
        %vm815 = vmand %vm807, %vm799
        %vm816 = vmand %vm808, %vm800
        %vm817 = vmand %vm809, %vm801
        %v818 = vadd.s32 %v744, 16
        %v819 = vadd.s32 %v751, 16
        %v820 = vadd.s32 %v758, 16
        %v821 = vadd.s32 %v765, 16
        %v822 = vadd.s32 %v772, 16
        %v823 = vadd.s32 %v779, 16
        %v824 = vadd.s32 %v786, 16
        %v825 = vadd.s32 %v793, 16
        %v826 = vsel %vm810, %v818, %v744
        %v827 = vsel %vm811, %v819, %v751
        %v828 = vsel %vm812, %v820, %v758
        %v829 = vsel %vm813, %v821, %v765
        %v830 = vsel %vm814, %v822, %v772
        %v831 = vsel %vm815, %v823, %v779
        %v832 = vsel %vm816, %v824, %v786
        %v833 = vsel %vm817, %v825, %v793
        %vm834 = vcmp.eq.s32.totalorder %v826, 0
        %vm835 = vcmp.eq.s32.totalorder %v827, 0
        %vm836 = vcmp.eq.s32.totalorder %v828, 0
        %vm837 = vcmp.eq.s32.totalorder %v829, 0
        %vm838 = vcmp.eq.s32.totalorder %v830, 0
        %vm839 = vcmp.eq.s32.totalorder %v831, 0
        %vm840 = vcmp.eq.s32.totalorder %v832, 0
        %vm841 = vcmp.eq.s32.totalorder %v833, 0
        %vm842 = vcmp.ge.s32.totalorder %v826, 15
        %vm843 = vcmp.ge.s32.totalorder %v827, 15
        %vm844 = vcmp.ge.s32.totalorder %v828, 15
        %vm845 = vcmp.ge.s32.totalorder %v829, 15
        %vm846 = vcmp.ge.s32.totalorder %v830, 15
        %vm847 = vcmp.ge.s32.totalorder %v831, 15
        %vm848 = vcmp.ge.s32.totalorder %v832, 15
        %vm849 = vcmp.ge.s32.totalorder %v833, 15
        %v850 = vld [vmem:[%s726] sm:$0xff]
        %v851 = vld [vmem:[%s726 + $0x8] sm:$0xff]
        %v852 = vld [vmem:[%s726 + $0x10] sm:$0xff]
        %v853 = vld [vmem:[%s726 + $0x18] sm:$0xff]
        %v854 = vld [vmem:[%s726 + $0x20] sm:$0xff]
        %v855 = vld [vmem:[%s726 + $0x28] sm:$0xff]
        %v856 = vld [vmem:[%s726 + $0x30] sm:$0xff]
        %v857 = vld [vmem:[%s726 + $0x38] sm:$0xff]
        %v858 = vld [vmem:[%s1] sm:$0x1]
        %v860 = vperm.slane %v858, 0
        %v862 = vmul.f32 %v850, %v860
        %v863 = vmul.f32 %v851, %v860
        %v864 = vmul.f32 %v852, %v860
        %v865 = vmul.f32 %v853, %v860
        %v866 = vmul.f32 %v854, %v860
        %v867 = vmul.f32 %v855, %v860
        %v868 = vmul.f32 %v856, %v860
        %v869 = vmul.f32 %v857, %v860
        %v870 = vld [vmem:[%s2] sm:$0x1]
        %v872 = vperm.slane %v870, 0
        %v874 = vadd.f32 %v862, %v872
        %v875 = vadd.f32 %v863, %v872
        %v876 = vadd.f32 %v864, %v872
        %v877 = vadd.f32 %v865, %v872
        %v878 = vadd.f32 %v866, %v872
        %v879 = vadd.f32 %v867, %v872
        %v880 = vadd.f32 %v868, %v872
        %v881 = vadd.f32 %v869, %v872
        %vm890 = vcmask 1040384
        %v891 = vrot.slane %v874, 7
        %v892 = vrot.slane %v875, 7
        %v893 = vsel %vm890, %v891, %v892
        %v894 = vrot.slane %v876, 7
        %v895 = vsel %vm890, %v892, %v894
        %v896 = vrot.slane %v877, 7
        %v897 = vsel %vm890, %v894, %v896
        %v898 = vrot.slane %v878, 7
        %v899 = vsel %vm890, %v896, %v898
        %v900 = vrot.slane %v879, 7
        %v901 = vsel %vm890, %v898, %v900
        %v902 = vrot.slane %v880, 7
        %v903 = vsel %vm890, %v900, %v902
        %v904 = vrot.slane %v881, 7
        %v905 = vsel %vm890, %v902, %v904
        %v914 = vsel %vm890, 0.0, %v891
        %vm915 = vcmask 1046528
        %v916 = vrot.slane %v874, 1
        %v917 = vrot.slane %v875, 1
        %v918 = vsel %vm915, %v916, %v917
        %v919 = vrot.slane %v876, 1
        %v920 = vsel %vm915, %v917, %v919
        %v921 = vrot.slane %v877, 1
        %v922 = vsel %vm915, %v919, %v921
        %v923 = vrot.slane %v878, 1
        %v924 = vsel %vm915, %v921, %v923
        %v925 = vrot.slane %v879, 1
        %v926 = vsel %vm915, %v923, %v925
        %v927 = vrot.slane %v880, 1
        %v928 = vsel %vm915, %v925, %v927
        %v929 = vrot.slane %v881, 1
        %v930 = vsel %vm915, %v927, %v929
        %v939 = vsel %vm915, %v929, 0.0
        %v940 = vsel %vm834, 1, 0
        %v941 = vsel %vm835, 1, 0
        %v942 = vsel %vm836, 1, 0
        %v943 = vsel %vm837, 1, 0
        %v944 = vsel %vm838, 1, 0
        %v945 = vsel %vm839, 1, 0
        %v946 = vsel %vm840, 1, 0
        %v947 = vsel %vm841, 1, 0
        %vm948 = vcmp.eq.s32.totalorder %v940, 1
        %vm949 = vcmp.eq.s32.totalorder %v941, 1
        %vm950 = vcmp.eq.s32.totalorder %v942, 1
        %vm951 = vcmp.eq.s32.totalorder %v943, 1
        %vm952 = vcmp.eq.s32.totalorder %v944, 1
        %vm953 = vcmp.eq.s32.totalorder %v945, 1
        %vm954 = vcmp.eq.s32.totalorder %v946, 1
        %vm955 = vcmp.eq.s32.totalorder %v947, 1
        %v956 = vsel %vm948, 0.0, %v914
        %v957 = vsel %vm949, 0.0, %v893
        %v958 = vsel %vm950, 0.0, %v895
        %v959 = vsel %vm951, 0.0, %v897
        %v960 = vsel %vm952, 0.0, %v899
        %v961 = vsel %vm953, 0.0, %v901
        %v962 = vsel %vm954, 0.0, %v903
        %v963 = vsel %vm955, 0.0, %v905
        %v964 = vsel %vm842, 1, 0
        %v965 = vsel %vm843, 1, 0
        %v966 = vsel %vm844, 1, 0
        %v967 = vsel %vm845, 1, 0
        %v968 = vsel %vm846, 1, 0
        %v969 = vsel %vm847, 1, 0
        %v970 = vsel %vm848, 1, 0
        %v971 = vsel %vm849, 1, 0
        %vm972 = vcmp.eq.s32.totalorder %v964, 1
        %vm973 = vcmp.eq.s32.totalorder %v965, 1
        %vm974 = vcmp.eq.s32.totalorder %v966, 1
        %vm975 = vcmp.eq.s32.totalorder %v967, 1
        %vm976 = vcmp.eq.s32.totalorder %v968, 1
        %vm977 = vcmp.eq.s32.totalorder %v969, 1
        %vm978 = vcmp.eq.s32.totalorder %v970, 1
        %vm979 = vcmp.eq.s32.totalorder %v971, 1
        %v980 = vsel %vm972, 0.0, %v918
        %v981 = vsel %vm973, 0.0, %v920
        %v982 = vsel %vm974, 0.0, %v922
        %v983 = vsel %vm975, 0.0, %v924
        %v984 = vsel %vm976, 0.0, %v926
        %v985 = vsel %vm977, 0.0, %v928
        %v986 = vsel %vm978, 0.0, %v930
        %v987 = vsel %vm979, 0.0, %v939
        %988 = vrot.lane.b32.xlu0 %v874, 8
        %v989 = vpop.permute.xlu0 %988
        %990 = vrot.lane.b32.xlu0 %v875, 8
        %v991 = vpop.permute.xlu0 %990
        %992 = vrot.lane.b32.xlu0 %v876, 8
        %v993 = vpop.permute.xlu0 %992
        %994 = vrot.lane.b32.xlu0 %v877, 8
        %v995 = vpop.permute.xlu0 %994
        %996 = vrot.lane.b32.xlu0 %v878, 8
        %v997 = vpop.permute.xlu0 %996
        %998 = vrot.lane.b32.xlu0 %v879, 8
        %v999 = vpop.permute.xlu0 %998
        %1000 = vrot.lane.b32.xlu0 %v880, 8
        %v1001 = vpop.permute.xlu0 %1000
        %1002 = vrot.lane.b32.xlu0 %v881, 8
        %v1003 = vpop.permute.xlu0 %1002
        %1020 = vrot.lane.b32.xlu0 %v980, 16
        %v1021 = vpop.permute.xlu0 %1020
        %1022 = vrot.lane.b32.xlu0 %v981, 16
        %v1023 = vpop.permute.xlu0 %1022
        %1024 = vrot.lane.b32.xlu0 %v982, 16
        %v1025 = vpop.permute.xlu0 %1024
        %1026 = vrot.lane.b32.xlu0 %v983, 16
        %v1027 = vpop.permute.xlu0 %1026
        %1028 = vrot.lane.b32.xlu0 %v984, 16
        %v1029 = vpop.permute.xlu0 %1028
        %1030 = vrot.lane.b32.xlu0 %v985, 16
        %v1031 = vpop.permute.xlu0 %1030
        %1032 = vrot.lane.b32.xlu0 %v986, 16
        %v1033 = vpop.permute.xlu0 %1032
        %1034 = vrot.lane.b32.xlu0 %v987, 16
        %v1035 = vpop.permute.xlu0 %1034
        %vm1044 = vcmask 64512
        %v1045 = vsel %vm1044, %v956, %v989
        %v1046 = vsel %vm1044, %v957, %v991
        %v1047 = vsel %vm1044, %v958, %v993
        %v1048 = vsel %vm1044, %v959, %v995
        %v1049 = vsel %vm1044, %v960, %v997
        %v1050 = vsel %vm1044, %v961, %v999
        %v1051 = vsel %vm1044, %v962, %v1001
        %v1052 = vsel %vm1044, %v963, %v1003
        %vm1053 = vcmask 130048
        %v1054 = vsel %vm1053, %v1045, %v1021
        %v1055 = vsel %vm1053, %v1046, %v1023
        %v1056 = vsel %vm1053, %v1047, %v1025
        %v1057 = vsel %vm1053, %v1048, %v1027
        %v1058 = vsel %vm1053, %v1049, %v1029
        %v1059 = vsel %vm1053, %v1050, %v1031
        %v1060 = vsel %vm1053, %v1051, %v1033
        %v1061 = vsel %vm1053, %v1052, %v1035
        %v1062 = vld [vmem:[%s3] sm:$0xff]
        %v1063 = vld [vmem:[%s3 + $0x8] sm:$0xff]
        %v1064 = vld [vmem:[%s3 + $0x10] sm:$0xff]
        %v1065 = vld [vmem:[%s4] sm:$0x1]
        %v1067 = vperm.slane %v1065, 0
        %vm1069 = vcmask 195584
        %v1071 = vsel %vm1069, %v1054, 0
        %v1074 = vsel %vm1069, %v1055, 0
        %v1077 = vsel %vm1069, %v1056, 0
        %v1080 = vsel %vm1069, %v1057, 0
        %v1083 = vsel %vm1069, %v1058, 0
        %v1086 = vsel %vm1069, %v1059, 0
        %v1089 = vsel %vm1069, %v1060, 0
        %v1092 = vsel %vm1069, %v1061, 0
        %1094 = vmatpush.msra.mxu0 0.0
        %1095 = vmatpush.msra.mxu0 0.0
        %1096 = vmatpush.msra.mxu0 0.0
        %1097 = vmatpush.msra.mxu0 0.0
        %1098 = vmatpush.msra.mxu0 0.0
        %1099 = vmatpush.msra.mxu0 0.0
        %1100 = vmatpush.msra.mxu0 0.0
        %1101 = vmatpush.msra.mxu0 0.0
        %1102 = vmatpush.msra.mxu0 0.0
        %1103 = vmatpush.msra.mxu0 0.0
        %1104 = vmatpush.msra.mxu0 0.0
        %1105 = vmatpush.msra.mxu0 0.0
        %1106 = vmatpush.msra.mxu0 0.0
        %1107 = vmatpush.msra.mxu0 %v1064
        %1108 = vmatpush.msra.mxu0 %v1063
        %1109 = vmatpush.msra.mxu0 %v1062
        %1110 = vmatmul.f32.gmra.mxu0 %v1071
        %v1111 = vpop.f32.mrf.mxu0
        %v1112 = vadd.f32 %v1067, %v1111
        %1113 = vmatmul.f32.gmra.mxu0 %v1074
        %v1114 = vpop.f32.mrf.mxu0
        %v1115 = vadd.f32 %v1067, %v1114
        %1116 = vmatmul.f32.gmra.mxu0 %v1077
        %v1117 = vpop.f32.mrf.mxu0
        %v1118 = vadd.f32 %v1067, %v1117
        %1119 = vmatmul.f32.gmra.mxu0 %v1080
        %v1120 = vpop.f32.mrf.mxu0
        %v1121 = vadd.f32 %v1067, %v1120
        %1122 = vmatmul.f32.gmra.mxu0 %v1083
        %v1123 = vpop.f32.mrf.mxu0
        %v1124 = vadd.f32 %v1067, %v1123
        %1125 = vmatmul.f32.gmra.mxu0 %v1086
        %v1126 = vpop.f32.mrf.mxu0
        %v1127 = vadd.f32 %v1067, %v1126
        %1128 = vmatmul.f32.gmra.mxu0 %v1089
        %v1129 = vpop.f32.mrf.mxu0
        %v1130 = vadd.f32 %v1067, %v1129
        %1131 = vmatmul.f32.gmra.mxu0 %v1092
        %v1132 = vpop.f32.mrf.mxu0
        %v1133 = vadd.f32 %v1067, %v1132
        %1134 = vdwg.mxu0
        %v1135 = vmax.f32 %v1112, 0.0
        %v1136 = vmax.f32 %v1115, 0.0
        %v1137 = vmax.f32 %v1118, 0.0
        %v1138 = vmax.f32 %v1121, 0.0
        %v1139 = vmax.f32 %v1124, 0.0
        %v1140 = vmax.f32 %v1127, 0.0
        %v1141 = vmax.f32 %v1130, 0.0
        %v1142 = vmax.f32 %v1133, 0.0
        %v1143 = vld [vmem:[%s5] sm:$0x1]
        %v1145 = vperm.slane %v1143, 0
        %v1147 = vmul.f32 %v1135, %v1145
        %v1148 = vmul.f32 %v1136, %v1145
        %v1149 = vmul.f32 %v1137, %v1145
        %v1150 = vmul.f32 %v1138, %v1145
        %v1151 = vmul.f32 %v1139, %v1145
        %v1152 = vmul.f32 %v1140, %v1145
        %v1153 = vmul.f32 %v1141, %v1145
        %v1154 = vmul.f32 %v1142, %v1145
        %v1155 = vld [vmem:[%s6] sm:$0x1]
        %v1157 = vperm.slane %v1155, 0
        %v1159 = vadd.f32 %v1147, %v1157
        %v1160 = vadd.f32 %v1148, %v1157
        %v1161 = vadd.f32 %v1149, %v1157
        %v1162 = vadd.f32 %v1150, %v1157
        %v1163 = vadd.f32 %v1151, %v1157
        %v1164 = vadd.f32 %v1152, %v1157
        %v1165 = vadd.f32 %v1153, %v1157
        %v1166 = vadd.f32 %v1154, %v1157
        %v1175 = vrot.slane %v1159, 7
        %v1176 = vrot.slane %v1160, 7
        %v1177 = vsel %vm890, %v1175, %v1176
        %v1178 = vrot.slane %v1161, 7
        %v1179 = vsel %vm890, %v1176, %v1178
        %v1180 = vrot.slane %v1162, 7
        %v1181 = vsel %vm890, %v1178, %v1180
        %v1182 = vrot.slane %v1163, 7
        %v1183 = vsel %vm890, %v1180, %v1182
        %v1184 = vrot.slane %v1164, 7
        %v1185 = vsel %vm890, %v1182, %v1184
        %v1186 = vrot.slane %v1165, 7
        %v1187 = vsel %vm890, %v1184, %v1186
        %v1188 = vrot.slane %v1166, 7
        %v1189 = vsel %vm890, %v1186, %v1188
        %v1198 = vsel %vm890, 0.0, %v1175
        %v1199 = vrot.slane %v1159, 1
        %v1200 = vrot.slane %v1160, 1
        %v1201 = vsel %vm915, %v1199, %v1200
        %v1202 = vrot.slane %v1161, 1
        %v1203 = vsel %vm915, %v1200, %v1202
        %v1204 = vrot.slane %v1162, 1
        %v1205 = vsel %vm915, %v1202, %v1204
        %v1206 = vrot.slane %v1163, 1
        %v1207 = vsel %vm915, %v1204, %v1206
        %v1208 = vrot.slane %v1164, 1
        %v1209 = vsel %vm915, %v1206, %v1208
        %v1210 = vrot.slane %v1165, 1
        %v1211 = vsel %vm915, %v1208, %v1210
        %v1212 = vrot.slane %v1166, 1
        %v1213 = vsel %vm915, %v1210, %v1212
        %v1222 = vsel %vm915, %v1212, 0.0
        %v1223 = vsel %vm948, 0.0, %v1198
        %v1224 = vsel %vm949, 0.0, %v1177
        %v1225 = vsel %vm950, 0.0, %v1179
        %v1226 = vsel %vm951, 0.0, %v1181
        %v1227 = vsel %vm952, 0.0, %v1183
        %v1228 = vsel %vm953, 0.0, %v1185
        %v1229 = vsel %vm954, 0.0, %v1187
        %v1230 = vsel %vm955, 0.0, %v1189
        %v1231 = vsel %vm972, 0.0, %v1201
        %v1232 = vsel %vm973, 0.0, %v1203
        %v1233 = vsel %vm974, 0.0, %v1205
        %v1234 = vsel %vm975, 0.0, %v1207
        %v1235 = vsel %vm976, 0.0, %v1209
        %v1236 = vsel %vm977, 0.0, %v1211
        %v1237 = vsel %vm978, 0.0, %v1213
        %v1238 = vsel %vm979, 0.0, %v1222
        %1239 = vrot.lane.b32.xlu0 %v1159, 16
        %v1240 = vpop.permute.xlu0 %1239
        %1241 = vrot.lane.b32.xlu0 %v1160, 16
        %v1242 = vpop.permute.xlu0 %1241
        %1243 = vrot.lane.b32.xlu0 %v1161, 16
        %v1244 = vpop.permute.xlu0 %1243
        %1245 = vrot.lane.b32.xlu0 %v1162, 16
        %v1246 = vpop.permute.xlu0 %1245
        %1247 = vrot.lane.b32.xlu0 %v1163, 16
        %v1248 = vpop.permute.xlu0 %1247
        %1249 = vrot.lane.b32.xlu0 %v1164, 16
        %v1250 = vpop.permute.xlu0 %1249
        %1251 = vrot.lane.b32.xlu0 %v1165, 16
        %v1252 = vpop.permute.xlu0 %1251
        %1253 = vrot.lane.b32.xlu0 %v1166, 16
        %v1254 = vpop.permute.xlu0 %1253
        %1271 = vrot.lane.b32.xlu0 %v1231, 32
        %v1272 = vpop.permute.xlu0 %1271
        %1273 = vrot.lane.b32.xlu0 %v1232, 32
        %v1274 = vpop.permute.xlu0 %1273
        %1275 = vrot.lane.b32.xlu0 %v1233, 32
        %v1276 = vpop.permute.xlu0 %1275
        %1277 = vrot.lane.b32.xlu0 %v1234, 32
        %v1278 = vpop.permute.xlu0 %1277
        %1279 = vrot.lane.b32.xlu0 %v1235, 32
        %v1280 = vpop.permute.xlu0 %1279
        %1281 = vrot.lane.b32.xlu0 %v1236, 32
        %v1282 = vpop.permute.xlu0 %1281
        %1283 = vrot.lane.b32.xlu0 %v1237, 32
        %v1284 = vpop.permute.xlu0 %1283
        %1285 = vrot.lane.b32.xlu0 %v1238, 32
        %v1286 = vpop.permute.xlu0 %1285
        %v1295 = vsel %vm1053, %v1223, %v1240
        %v1296 = vsel %vm1053, %v1224, %v1242
        %v1297 = vsel %vm1053, %v1225, %v1244
        %v1298 = vsel %vm1053, %v1226, %v1246
        %v1299 = vsel %vm1053, %v1227, %v1248
        %v1300 = vsel %vm1053, %v1228, %v1250
        %v1301 = vsel %vm1053, %v1229, %v1252
        %v1302 = vsel %vm1053, %v1230, %v1254
        %vm1303 = vcmask 261120
        %v1304 = vsel %vm1303, %v1295, %v1272
        %v1305 = vsel %vm1303, %v1296, %v1274
        %v1306 = vsel %vm1303, %v1297, %v1276
        %v1307 = vsel %vm1303, %v1298, %v1278
        %v1308 = vsel %vm1303, %v1299, %v1280
        %v1309 = vsel %vm1303, %v1300, %v1282
        %v1310 = vsel %vm1303, %v1301, %v1284
        %v1311 = vsel %vm1303, %v1302, %v1286
        %v1312 = vld [vmem:[%s7] sm:$0xff]
        %v1313 = vld [vmem:[%s7 + $0x8] sm:$0xff]
        %v1314 = vld [vmem:[%s7 + $0x10] sm:$0xff]
        %v1315 = vld [vmem:[%s7 + $0x18] sm:$0xff]
        %v1316 = vld [vmem:[%s7 + $0x20] sm:$0xff]
        %v1317 = vld [vmem:[%s7 + $0x28] sm:$0xff]
        %v1318 = vld [vmem:[%s8] sm:$0x1]
        %v1320 = vperm.slane %v1318, 0
        %vm1322 = vcmask 392192
        %v1324 = vsel %vm1322, %v1304, 0
        %v1327 = vsel %vm1322, %v1305, 0
        %v1330 = vsel %vm1322, %v1306, 0
        %v1333 = vsel %vm1322, %v1307, 0
        %v1336 = vsel %vm1322, %v1308, 0
        %v1339 = vsel %vm1322, %v1309, 0
        %v1342 = vsel %vm1322, %v1310, 0
        %v1345 = vsel %vm1322, %v1311, 0
        %1347 = vmatpush.msra.mxu0 0.0
        %1348 = vmatpush.msra.mxu0 0.0
        %1349 = vmatpush.msra.mxu0 0.0
        %1350 = vmatpush.msra.mxu0 0.0
        %1351 = vmatpush.msra.mxu0 0.0
        %1352 = vmatpush.msra.mxu0 0.0
        %1353 = vmatpush.msra.mxu0 0.0
        %1354 = vmatpush.msra.mxu0 0.0
        %1355 = vmatpush.msra.mxu0 0.0
        %1356 = vmatpush.msra.mxu0 0.0
        %1357 = vmatpush.msra.mxu0 %v1317
        %1358 = vmatpush.msra.mxu0 %v1316
        %1359 = vmatpush.msra.mxu0 %v1315
        %1360 = vmatpush.msra.mxu0 %v1314
        %1361 = vmatpush.msra.mxu0 %v1313
        %1362 = vmatpush.msra.mxu0 %v1312
        %1363 = vmatmul.f32.gmra.mxu0 %v1324
        %v1364 = vpop.f32.mrf.mxu0
        %v1365 = vadd.f32 %v1320, %v1364
        %1366 = vmatmul.f32.gmra.mxu0 %v1327
        %v1367 = vpop.f32.mrf.mxu0
        %v1368 = vadd.f32 %v1320, %v1367
        %1369 = vmatmul.f32.gmra.mxu0 %v1330
        %v1370 = vpop.f32.mrf.mxu0
        %v1371 = vadd.f32 %v1320, %v1370
        %1372 = vmatmul.f32.gmra.mxu0 %v1333
        %v1373 = vpop.f32.mrf.mxu0
        %v1374 = vadd.f32 %v1320, %v1373
        %1375 = vmatmul.f32.gmra.mxu0 %v1336
        %v1376 = vpop.f32.mrf.mxu0
        %v1377 = vadd.f32 %v1320, %v1376
        %1378 = vmatmul.f32.gmra.mxu0 %v1339
        %v1379 = vpop.f32.mrf.mxu0
        %v1380 = vadd.f32 %v1320, %v1379
        %1381 = vmatmul.f32.gmra.mxu0 %v1342
        %v1382 = vpop.f32.mrf.mxu0
        %v1383 = vadd.f32 %v1320, %v1382
        %1384 = vmatmul.f32.gmra.mxu0 %v1345
        %v1385 = vpop.f32.mrf.mxu0
        %v1386 = vadd.f32 %v1320, %v1385
        %1387 = vdwg.mxu0
        %v1388 = vmax.f32 %v1365, 0.0
        %v1389 = vmax.f32 %v1368, 0.0
        %v1390 = vmax.f32 %v1371, 0.0
        %v1391 = vmax.f32 %v1374, 0.0
        %v1392 = vmax.f32 %v1377, 0.0
        %v1393 = vmax.f32 %v1380, 0.0
        %v1394 = vmax.f32 %v1383, 0.0
        %v1395 = vmax.f32 %v1386, 0.0
        %v1396 = vld [vmem:[%s9] sm:$0x1]
        %v1398 = vperm.slane %v1396, 0
        %v1400 = vmul.f32 %v1388, %v1398
        %v1401 = vmul.f32 %v1389, %v1398
        %v1402 = vmul.f32 %v1390, %v1398
        %v1403 = vmul.f32 %v1391, %v1398
        %v1404 = vmul.f32 %v1392, %v1398
        %v1405 = vmul.f32 %v1393, %v1398
        %v1406 = vmul.f32 %v1394, %v1398
        %v1407 = vmul.f32 %v1395, %v1398
        %v1408 = vld [vmem:[%s10] sm:$0x1]
        %v1410 = vperm.slane %v1408, 0
        %v1412 = vadd.f32 %v1400, %v1410
        %v1413 = vadd.f32 %v1401, %v1410
        %v1414 = vadd.f32 %v1402, %v1410
        %v1415 = vadd.f32 %v1403, %v1410
        %v1416 = vadd.f32 %v1404, %v1410
        %v1417 = vadd.f32 %v1405, %v1410
        %v1418 = vadd.f32 %v1406, %v1410
        %v1419 = vadd.f32 %v1407, %v1410
        %v1428 = vrot.slane %v1412, 7
        %v1429 = vrot.slane %v1413, 7
        %v1430 = vsel %vm890, %v1428, %v1429
        %v1431 = vrot.slane %v1414, 7
        %v1432 = vsel %vm890, %v1429, %v1431
        %v1433 = vrot.slane %v1415, 7
        %v1434 = vsel %vm890, %v1431, %v1433
        %v1435 = vrot.slane %v1416, 7
        %v1436 = vsel %vm890, %v1433, %v1435
        %v1437 = vrot.slane %v1417, 7
        %v1438 = vsel %vm890, %v1435, %v1437
        %v1439 = vrot.slane %v1418, 7
        %v1440 = vsel %vm890, %v1437, %v1439
        %v1441 = vrot.slane %v1419, 7
        %v1442 = vsel %vm890, %v1439, %v1441
        %v1451 = vsel %vm890, 0.0, %v1428
        %v1452 = vrot.slane %v1412, 1
        %v1453 = vrot.slane %v1413, 1
        %v1454 = vsel %vm915, %v1452, %v1453
        %v1455 = vrot.slane %v1414, 1
        %v1456 = vsel %vm915, %v1453, %v1455
        %v1457 = vrot.slane %v1415, 1
        %v1458 = vsel %vm915, %v1455, %v1457
        %v1459 = vrot.slane %v1416, 1
        %v1460 = vsel %vm915, %v1457, %v1459
        %v1461 = vrot.slane %v1417, 1
        %v1462 = vsel %vm915, %v1459, %v1461
        %v1463 = vrot.slane %v1418, 1
        %v1464 = vsel %vm915, %v1461, %v1463
        %v1465 = vrot.slane %v1419, 1
        %v1466 = vsel %vm915, %v1463, %v1465
        %v1475 = vsel %vm915, %v1465, 0.0
        %v1476 = vsel %vm948, 0.0, %v1451
        %v1477 = vsel %vm949, 0.0, %v1430
        %v1478 = vsel %vm950, 0.0, %v1432
        %v1479 = vsel %vm951, 0.0, %v1434
        %v1480 = vsel %vm952, 0.0, %v1436
        %v1481 = vsel %vm953, 0.0, %v1438
        %v1482 = vsel %vm954, 0.0, %v1440
        %v1483 = vsel %vm955, 0.0, %v1442
        %v1484 = vsel %vm972, 0.0, %v1454
        %v1485 = vsel %vm973, 0.0, %v1456
        %v1486 = vsel %vm974, 0.0, %v1458
        %v1487 = vsel %vm975, 0.0, %v1460
        %v1488 = vsel %vm976, 0.0, %v1462
        %v1489 = vsel %vm977, 0.0, %v1464
        %v1490 = vsel %vm978, 0.0, %v1466
        %v1491 = vsel %vm979, 0.0, %v1475
        %1492 = vrot.lane.b32.xlu0 %v1412, 32
        %v1493 = vpop.permute.xlu0 %1492
        %1494 = vrot.lane.b32.xlu0 %v1413, 32
        %v1495 = vpop.permute.xlu0 %1494
        %1496 = vrot.lane.b32.xlu0 %v1414, 32
        %v1497 = vpop.permute.xlu0 %1496
        %1498 = vrot.lane.b32.xlu0 %v1415, 32
        %v1499 = vpop.permute.xlu0 %1498
        %1500 = vrot.lane.b32.xlu0 %v1416, 32
        %v1501 = vpop.permute.xlu0 %1500
        %1502 = vrot.lane.b32.xlu0 %v1417, 32
        %v1503 = vpop.permute.xlu0 %1502
        %1504 = vrot.lane.b32.xlu0 %v1418, 32
        %v1505 = vpop.permute.xlu0 %1504
        %1506 = vrot.lane.b32.xlu0 %v1419, 32
        %v1507 = vpop.permute.xlu0 %1506
        %1524 = vrot.lane.b32.xlu0 %v1484, 64
        %v1525 = vpop.permute.xlu0 %1524
        %1526 = vrot.lane.b32.xlu0 %v1485, 64
        %v1527 = vpop.permute.xlu0 %1526
        %1528 = vrot.lane.b32.xlu0 %v1486, 64
        %v1529 = vpop.permute.xlu0 %1528
        %1530 = vrot.lane.b32.xlu0 %v1487, 64
        %v1531 = vpop.permute.xlu0 %1530
        %1532 = vrot.lane.b32.xlu0 %v1488, 64
        %v1533 = vpop.permute.xlu0 %1532
        %1534 = vrot.lane.b32.xlu0 %v1489, 64
        %v1535 = vpop.permute.xlu0 %1534
        %1536 = vrot.lane.b32.xlu0 %v1490, 64
        %v1537 = vpop.permute.xlu0 %1536
        %1538 = vrot.lane.b32.xlu0 %v1491, 64
        %v1539 = vpop.permute.xlu0 %1538
        %v1548 = vsel %vm1303, %v1476, %v1493
        %v1549 = vsel %vm1303, %v1477, %v1495
        %v1550 = vsel %vm1303, %v1478, %v1497
        %v1551 = vsel %vm1303, %v1479, %v1499
        %v1552 = vsel %vm1303, %v1480, %v1501
        %v1553 = vsel %vm1303, %v1481, %v1503
        %v1554 = vsel %vm1303, %v1482, %v1505
        %v1555 = vsel %vm1303, %v1483, %v1507
        %vm1556 = vcmask 523264
        %v1557 = vsel %vm1556, %v1548, %v1525
        %v1558 = vsel %vm1556, %v1549, %v1527
        %v1559 = vsel %vm1556, %v1550, %v1529
        %v1560 = vsel %vm1556, %v1551, %v1531
        %v1561 = vsel %vm1556, %v1552, %v1533
        %v1562 = vsel %vm1556, %v1553, %v1535
        %v1563 = vsel %vm1556, %v1554, %v1537
        %v1564 = vsel %vm1556, %v1555, %v1539
        %v1565 = vld [vmem:[%s11] sm:$0xff]
        %v1566 = vld [vmem:[%s11 + $0x8] sm:$0xff]
        %v1567 = vld [vmem:[%s11 + $0x10] sm:$0xff]
        %v1568 = vld [vmem:[%s11 + $0x18] sm:$0xff]
        %v1569 = vld [vmem:[%s11 + $0x20] sm:$0xff]
        %v1570 = vld [vmem:[%s11 + $0x28] sm:$0xff]
        %v1571 = vld [vmem:[%s11 + $0x30] sm:$0xff]
        %v1572 = vld [vmem:[%s11 + $0x38] sm:$0xff]
        %v1573 = vld [vmem:[%s11 + $0x40] sm:$0xff]
        %v1574 = vld [vmem:[%s11 + $0x48] sm:$0xff]
        %v1575 = vld [vmem:[%s11 + $0x50] sm:$0xff]
        %v1576 = vld [vmem:[%s11 + $0x58] sm:$0xff]
        %v1577 = vld [vmem:[%s12] sm:$0x1]
        %v1579 = vperm.slane %v1577, 0
        %vm1581 = vcmask 785408
        %v1583 = vsel %vm1581, %v1557, 0
        %v1586 = vsel %vm1581, %v1558, 0
        %v1589 = vsel %vm1581, %v1559, 0
        %v1592 = vsel %vm1581, %v1560, 0
        %v1595 = vsel %vm1581, %v1561, 0
        %v1598 = vsel %vm1581, %v1562, 0
        %v1601 = vsel %vm1581, %v1563, 0
        %v1604 = vsel %vm1581, %v1564, 0
        %1606 = vmatpush.msra.mxu0 0.0
        %1607 = vmatpush.msra.mxu0 0.0
        %1608 = vmatpush.msra.mxu0 0.0
        %1609 = vmatpush.msra.mxu0 0.0
        %1610 = vmatpush.msra.mxu0 %v1576
        %1611 = vmatpush.msra.mxu0 %v1575
        %1612 = vmatpush.msra.mxu0 %v1574
        %1613 = vmatpush.msra.mxu0 %v1573
        %1614 = vmatpush.msra.mxu0 %v1572
        %1615 = vmatpush.msra.mxu0 %v1571
        %1616 = vmatpush.msra.mxu0 %v1570
        %1617 = vmatpush.msra.mxu0 %v1569
        %1618 = vmatpush.msra.mxu0 %v1568
        %1619 = vmatpush.msra.mxu0 %v1567
        %1620 = vmatpush.msra.mxu0 %v1566
        %1621 = vmatpush.msra.mxu0 %v1565
        %1622 = vmatmul.f32.gmra.mxu0 %v1583
        %v1623 = vpop.f32.mrf.mxu0
        %v1624 = vadd.f32 %v1579, %v1623
        %1625 = vmatmul.f32.gmra.mxu0 %v1586
        %v1626 = vpop.f32.mrf.mxu0
        %v1627 = vadd.f32 %v1579, %v1626
        %1628 = vmatmul.f32.gmra.mxu0 %v1589
        %v1629 = vpop.f32.mrf.mxu0
        %v1630 = vadd.f32 %v1579, %v1629
        %1631 = vmatmul.f32.gmra.mxu0 %v1592
        %v1632 = vpop.f32.mrf.mxu0
        %v1633 = vadd.f32 %v1579, %v1632
        %1634 = vmatmul.f32.gmra.mxu0 %v1595
        %v1635 = vpop.f32.mrf.mxu0
        %v1636 = vadd.f32 %v1579, %v1635
        %1637 = vmatmul.f32.gmra.mxu0 %v1598
        %v1638 = vpop.f32.mrf.mxu0
        %v1639 = vadd.f32 %v1579, %v1638
        %1640 = vmatmul.f32.gmra.mxu0 %v1601
        %v1641 = vpop.f32.mrf.mxu0
        %v1642 = vadd.f32 %v1579, %v1641
        %1643 = vmatmul.f32.gmra.mxu0 %v1604
        %v1644 = vpop.f32.mrf.mxu0
        %v1645 = vadd.f32 %v1579, %v1644
        %1646 = vdwg.mxu0
        %v1647 = vmax.f32 %v1624, 0.0
        %v1648 = vmax.f32 %v1627, 0.0
        %v1649 = vmax.f32 %v1630, 0.0
        %v1650 = vmax.f32 %v1633, 0.0
        %v1651 = vmax.f32 %v1636, 0.0
        %v1652 = vmax.f32 %v1639, 0.0
        %v1653 = vmax.f32 %v1642, 0.0
        %v1654 = vmax.f32 %v1645, 0.0
        %v1655 = vld [vmem:[%s13] sm:$0x1]
        %v1657 = vperm.slane %v1655, 0
        %v1659 = vmul.f32 %v1647, %v1657
        %v1660 = vmul.f32 %v1648, %v1657
        %v1661 = vmul.f32 %v1649, %v1657
        %v1662 = vmul.f32 %v1650, %v1657
        %v1663 = vmul.f32 %v1651, %v1657
        %v1664 = vmul.f32 %v1652, %v1657
        %v1665 = vmul.f32 %v1653, %v1657
        %v1666 = vmul.f32 %v1654, %v1657
        %v1667 = vld [vmem:[%s14] sm:$0x1]
        %v1669 = vperm.slane %v1667, 0
        %v1671 = vadd.f32 %v1659, %v1669
        %v1672 = vadd.f32 %v1660, %v1669
        %v1673 = vadd.f32 %v1661, %v1669
        %v1674 = vadd.f32 %v1662, %v1669
        %v1675 = vadd.f32 %v1663, %v1669
        %v1676 = vadd.f32 %v1664, %v1669
        %v1677 = vadd.f32 %v1665, %v1669
        %v1678 = vadd.f32 %v1666, %v1669
        %v1687 = vrot.slane %v1671, 7
        %v1688 = vrot.slane %v1672, 7
        %v1689 = vsel %vm890, %v1687, %v1688
        %v1690 = vrot.slane %v1673, 7
        %v1691 = vsel %vm890, %v1688, %v1690
        %v1692 = vrot.slane %v1674, 7
        %v1693 = vsel %vm890, %v1690, %v1692
        %v1694 = vrot.slane %v1675, 7
        %v1695 = vsel %vm890, %v1692, %v1694
        %v1696 = vrot.slane %v1676, 7
        %v1697 = vsel %vm890, %v1694, %v1696
        %v1698 = vrot.slane %v1677, 7
        %v1699 = vsel %vm890, %v1696, %v1698
        %v1700 = vrot.slane %v1678, 7
        %v1701 = vsel %vm890, %v1698, %v1700
        %v1710 = vsel %vm890, 0.0, %v1687
        %v1711 = vrot.slane %v1671, 1
        %v1712 = vrot.slane %v1672, 1
        %v1713 = vsel %vm915, %v1711, %v1712
        %v1714 = vrot.slane %v1673, 1
        %v1715 = vsel %vm915, %v1712, %v1714
        %v1716 = vrot.slane %v1674, 1
        %v1717 = vsel %vm915, %v1714, %v1716
        %v1718 = vrot.slane %v1675, 1
        %v1719 = vsel %vm915, %v1716, %v1718
        %v1720 = vrot.slane %v1676, 1
        %v1721 = vsel %vm915, %v1718, %v1720
        %v1722 = vrot.slane %v1677, 1
        %v1723 = vsel %vm915, %v1720, %v1722
        %v1724 = vrot.slane %v1678, 1
        %v1725 = vsel %vm915, %v1722, %v1724
        %v1734 = vsel %vm915, %v1724, 0.0
        %v1735 = vsel %vm948, 0.0, %v1710
        %v1736 = vsel %vm949, 0.0, %v1689
        %v1737 = vsel %vm950, 0.0, %v1691
        %v1738 = vsel %vm951, 0.0, %v1693
        %v1739 = vsel %vm952, 0.0, %v1695
        %v1740 = vsel %vm953, 0.0, %v1697
        %v1741 = vsel %vm954, 0.0, %v1699
        %v1742 = vsel %vm955, 0.0, %v1701
        %v1743 = vsel %vm972, 0.0, %v1713
        %v1744 = vsel %vm973, 0.0, %v1715
        %v1745 = vsel %vm974, 0.0, %v1717
        %v1746 = vsel %vm975, 0.0, %v1719
        %v1747 = vsel %vm976, 0.0, %v1721
        %v1748 = vsel %vm977, 0.0, %v1723
        %v1749 = vsel %vm978, 0.0, %v1725
        %v1750 = vsel %vm979, 0.0, %v1734
        %1751 = vrot.lane.b32.xlu0 %v1671, 64
        %v1752 = vpop.permute.xlu0 %1751
        %1753 = vrot.lane.b32.xlu0 %v1672, 64
        %v1754 = vpop.permute.xlu0 %1753
        %1755 = vrot.lane.b32.xlu0 %v1673, 64
        %v1756 = vpop.permute.xlu0 %1755
        %1757 = vrot.lane.b32.xlu0 %v1674, 64
        %v1758 = vpop.permute.xlu0 %1757
        %1759 = vrot.lane.b32.xlu0 %v1675, 64
        %v1760 = vpop.permute.xlu0 %1759
        %1761 = vrot.lane.b32.xlu0 %v1676, 64
        %v1762 = vpop.permute.xlu0 %1761
        %1763 = vrot.lane.b32.xlu0 %v1677, 64
        %v1764 = vpop.permute.xlu0 %1763
        %1765 = vrot.lane.b32.xlu0 %v1678, 64
        %v1766 = vpop.permute.xlu0 %1765
        %v1775 = vsel %vm1556, %v1735, %v1752
        %v1776 = vsel %vm1556, %v1736, %v1754
        %v1777 = vsel %vm1556, %v1737, %v1756
        %v1778 = vsel %vm1556, %v1738, %v1758
        %v1779 = vsel %vm1556, %v1739, %v1760
        %v1780 = vsel %vm1556, %v1740, %v1762
        %v1781 = vsel %vm1556, %v1741, %v1764
        %v1782 = vsel %vm1556, %v1742, %v1766
        %v1783 = vld [vmem:[#allocation2] sm:$0xff]
        %v1784 = vld [vmem:[#allocation2 + $0x8] sm:$0xff]
        %v1785 = vld [vmem:[#allocation2 + $0x10] sm:$0xff]
        %v1786 = vld [vmem:[#allocation2 + $0x18] sm:$0xff]
        %v1787 = vld [vmem:[#allocation2 + $0x20] sm:$0xff]
        %v1788 = vld [vmem:[#allocation2 + $0x28] sm:$0xff]
        %v1789 = vld [vmem:[#allocation2 + $0x30] sm:$0xff]
        %v1790 = vld [vmem:[#allocation2 + $0x38] sm:$0xff]
        %v1791 = vld [vmem:[#allocation2 + $0x40] sm:$0xff]
        %v1792 = vld [vmem:[#allocation2 + $0x48] sm:$0xff]
        %v1793 = vld [vmem:[#allocation2 + $0x50] sm:$0xff]
        %v1794 = vld [vmem:[#allocation2 + $0x58] sm:$0xff]
        %v1795 = vld [vmem:[#allocation2 + $0x60] sm:$0xff]
        %v1796 = vld [vmem:[#allocation2 + $0x68] sm:$0xff]
        %v1797 = vld [vmem:[#allocation2 + $0x70] sm:$0xff]
        %v1798 = vld [vmem:[#allocation2 + $0x78] sm:$0xff]
        %v1799 = vld [vmem:[#allocation2 + $0x80] sm:$0xff]
        %v1800 = vld [vmem:[#allocation2 + $0x88] sm:$0xff]
        %v1801 = vld [vmem:[#allocation2 + $0x90] sm:$0xff]
        %v1802 = vld [vmem:[#allocation2 + $0x98] sm:$0xff]
        %v1803 = vld [vmem:[#allocation2 + $0xa0] sm:$0xff]
        %v1804 = vld [vmem:[#allocation2 + $0xa8] sm:$0xff]
        %v1805 = vld [vmem:[#allocation2 + $0xb0] sm:$0xff]
        %v1806 = vld [vmem:[#allocation2 + $0xb8] sm:$0xff]
        %v1807 = vld [vmem:[%s16] sm:$0x1]
        %v1809 = vperm.slane %v1807, 0
        %v1812 = vsel %vm1556, %v1743, 0
        %v1815 = vsel %vm1556, %v1744, 0
        %v1818 = vsel %vm1556, %v1745, 0
        %v1821 = vsel %vm1556, %v1746, 0
        %v1824 = vsel %vm1556, %v1747, 0
        %v1827 = vsel %vm1556, %v1748, 0
        %v1830 = vsel %vm1556, %v1749, 0
        %v1833 = vsel %vm1556, %v1750, 0
        %1835 = vmatpush.msra.mxu0 %v1798
        %1836 = vmatpush.msra.mxu0 %v1797
        %1837 = vmatpush.msra.mxu0 %v1796
        %1838 = vmatpush.msra.mxu0 %v1795
        %1839 = vmatpush.msra.mxu0 %v1794
        %1840 = vmatpush.msra.mxu0 %v1793
        %1841 = vmatpush.msra.mxu0 %v1792
        %1842 = vmatpush.msra.mxu0 %v1791
        %1843 = vmatpush.msra.mxu0 %v1790
        %1844 = vmatpush.msra.mxu0 %v1789
        %1845 = vmatpush.msra.mxu0 %v1788
        %1846 = vmatpush.msra.mxu0 %v1787
        %1847 = vmatpush.msra.mxu0 %v1786
        %1848 = vmatpush.msra.mxu0 %v1785
        %1849 = vmatpush.msra.mxu0 %v1784
        %1850 = vmatpush.msra.mxu0 %v1783
        %1851 = vmatmul.f32.gmra.mxu0 %v1775
        %v1852 = vpop.f32.mrf.mxu0
        %v1853 = vadd.f32 %v1809, %v1852
        %1854 = vmatmul.f32.gmra.mxu0 %v1776
        %v1855 = vpop.f32.mrf.mxu0
        %v1856 = vadd.f32 %v1809, %v1855
        %1857 = vmatmul.f32.gmra.mxu0 %v1777
        %v1858 = vpop.f32.mrf.mxu0
        %v1859 = vadd.f32 %v1809, %v1858
        %1860 = vmatmul.f32.gmra.mxu0 %v1778
        %v1861 = vpop.f32.mrf.mxu0
        %v1862 = vadd.f32 %v1809, %v1861
        %1863 = vmatmul.f32.gmra.mxu0 %v1779
        %v1864 = vpop.f32.mrf.mxu0
        %v1865 = vadd.f32 %v1809, %v1864
        %1866 = vmatmul.f32.gmra.mxu0 %v1780
        %v1867 = vpop.f32.mrf.mxu0
        %v1868 = vadd.f32 %v1809, %v1867
        %1869 = vmatmul.f32.gmra.mxu0 %v1781
        %v1870 = vpop.f32.mrf.mxu0
        %v1871 = vadd.f32 %v1809, %v1870
        %1872 = vmatmul.f32.gmra.mxu0 %v1782
        %v1873 = vpop.f32.mrf.mxu0
        %v1874 = vadd.f32 %v1809, %v1873
        %1875 = vdwg.mxu0
        %1876 = vmatpush.msra.mxu0 0.0
        %1877 = vmatpush.msra.mxu0 0.0
        %1878 = vmatpush.msra.mxu0 0.0
        %1879 = vmatpush.msra.mxu0 0.0
        %1880 = vmatpush.msra.mxu0 0.0
        %1881 = vmatpush.msra.mxu0 0.0
        %1882 = vmatpush.msra.mxu0 0.0
        %1883 = vmatpush.msra.mxu0 0.0
        %1884 = vmatpush.msra.mxu0 %v1806
        %1885 = vmatpush.msra.mxu0 %v1805
        %1886 = vmatpush.msra.mxu0 %v1804
        %1887 = vmatpush.msra.mxu0 %v1803
        %1888 = vmatpush.msra.mxu0 %v1802
        %1889 = vmatpush.msra.mxu0 %v1801
        %1890 = vmatpush.msra.mxu0 %v1800
        %1891 = vmatpush.msra.mxu0 %v1799
        %1892 = vmatmul.f32.gmra.mxu0 %v1812
        %v1893 = vpop.f32.mrf.mxu0
        %v1894 = vadd.f32 %v1853, %v1893
        %1895 = vmatmul.f32.gmra.mxu0 %v1815
        %v1896 = vpop.f32.mrf.mxu0
        %v1897 = vadd.f32 %v1856, %v1896
        %1898 = vmatmul.f32.gmra.mxu0 %v1818
        %v1899 = vpop.f32.mrf.mxu0
        %v1900 = vadd.f32 %v1859, %v1899
        %1901 = vmatmul.f32.gmra.mxu0 %v1821
        %v1902 = vpop.f32.mrf.mxu0
        %v1903 = vadd.f32 %v1862, %v1902
        %1904 = vmatmul.f32.gmra.mxu0 %v1824
        %v1905 = vpop.f32.mrf.mxu0
        %v1906 = vadd.f32 %v1865, %v1905
        %1907 = vmatmul.f32.gmra.mxu0 %v1827
        %v1908 = vpop.f32.mrf.mxu0
        %v1909 = vadd.f32 %v1868, %v1908
        %1910 = vmatmul.f32.gmra.mxu0 %v1830
        %v1911 = vpop.f32.mrf.mxu0
        %v1912 = vadd.f32 %v1871, %v1911
        %1913 = vmatmul.f32.gmra.mxu0 %v1833
        %v1914 = vpop.f32.mrf.mxu0
        %v1915 = vadd.f32 %v1874, %v1914
        %1916 = vdwg.mxu0
        %v1917 = vmax.f32 %v1894, 0.0
        %v1918 = vmax.f32 %v1897, 0.0
        %v1919 = vmax.f32 %v1900, 0.0
        %v1920 = vmax.f32 %v1903, 0.0
        %v1921 = vmax.f32 %v1906, 0.0
        %v1922 = vmax.f32 %v1909, 0.0
        %v1923 = vmax.f32 %v1912, 0.0
        %v1924 = vmax.f32 %v1915, 0.0
        %v1925 = vld [vmem:[%s17] sm:$0x1]
        %v1927 = vperm.slane %v1925, 0
        %v1929 = vmul.f32 %v1917, %v1927
        %v1930 = vmul.f32 %v1918, %v1927
        %v1931 = vmul.f32 %v1919, %v1927
        %v1932 = vmul.f32 %v1920, %v1927
        %v1933 = vmul.f32 %v1921, %v1927
        %v1934 = vmul.f32 %v1922, %v1927
        %v1935 = vmul.f32 %v1923, %v1927
        %v1936 = vmul.f32 %v1924, %v1927
        %v1937 = vld [vmem:[%s18] sm:$0x1]
        %v1939 = vperm.slane %v1937, 0
        %v1941 = vadd.f32 %v1929, %v1939
        %v1942 = vadd.f32 %v1930, %v1939
        %v1943 = vadd.f32 %v1931, %v1939
        %v1944 = vadd.f32 %v1932, %v1939
        %v1945 = vadd.f32 %v1933, %v1939
        %v1946 = vadd.f32 %v1934, %v1939
        %v1947 = vadd.f32 %v1935, %v1939
        %v1948 = vadd.f32 %v1936, %v1939
        %1949 = vrot.lane.b32.xlu0 %v1412, 16
        %v1950 = vpop.permute.xlu0 %1949
        %1951 = vrot.lane.b32.xlu0 %v1413, 16
        %v1952 = vpop.permute.xlu0 %1951
        %1953 = vrot.lane.b32.xlu0 %v1414, 16
        %v1954 = vpop.permute.xlu0 %1953
        %1955 = vrot.lane.b32.xlu0 %v1415, 16
        %v1956 = vpop.permute.xlu0 %1955
        %1957 = vrot.lane.b32.xlu0 %v1416, 16
        %v1958 = vpop.permute.xlu0 %1957
        %1959 = vrot.lane.b32.xlu0 %v1417, 16
        %v1960 = vpop.permute.xlu0 %1959
        %1961 = vrot.lane.b32.xlu0 %v1418, 16
        %v1962 = vpop.permute.xlu0 %1961
        %1963 = vrot.lane.b32.xlu0 %v1419, 16
        %v1964 = vpop.permute.xlu0 %1963
        %1973 = vrot.lane.b32.xlu0 %v1671, 48
        %v1974 = vpop.permute.xlu0 %1973
        %1975 = vrot.lane.b32.xlu0 %v1672, 48
        %v1976 = vpop.permute.xlu0 %1975
        %1977 = vrot.lane.b32.xlu0 %v1673, 48
        %v1978 = vpop.permute.xlu0 %1977
        %1979 = vrot.lane.b32.xlu0 %v1674, 48
        %v1980 = vpop.permute.xlu0 %1979
        %1981 = vrot.lane.b32.xlu0 %v1675, 48
        %v1982 = vpop.permute.xlu0 %1981
        %1983 = vrot.lane.b32.xlu0 %v1676, 48
        %v1984 = vpop.permute.xlu0 %1983
        %1985 = vrot.lane.b32.xlu0 %v1677, 48
        %v1986 = vpop.permute.xlu0 %1985
        %1987 = vrot.lane.b32.xlu0 %v1678, 48
        %v1988 = vpop.permute.xlu0 %1987
        %2005 = vrot.lane.b32.xlu0 %v1941, 112
        %v2006 = vpop.permute.xlu0 %2005
        %2007 = vrot.lane.b32.xlu0 %v1942, 112
        %v2008 = vpop.permute.xlu0 %2007
        %2009 = vrot.lane.b32.xlu0 %v1943, 112
        %v2010 = vpop.permute.xlu0 %2009
        %2011 = vrot.lane.b32.xlu0 %v1944, 112
        %v2012 = vpop.permute.xlu0 %2011
        %2013 = vrot.lane.b32.xlu0 %v1945, 112
        %v2014 = vpop.permute.xlu0 %2013
        %2015 = vrot.lane.b32.xlu0 %v1946, 112
        %v2016 = vpop.permute.xlu0 %2015
        %2017 = vrot.lane.b32.xlu0 %v1947, 112
        %v2018 = vpop.permute.xlu0 %2017
        %2019 = vrot.lane.b32.xlu0 %v1948, 112
        %v2020 = vpop.permute.xlu0 %2019
        %v2029 = vsel %vm1053, %v1159, %v1950
        %v2030 = vsel %vm1053, %v1160, %v1952
        %v2031 = vsel %vm1053, %v1161, %v1954
        %v2032 = vsel %vm1053, %v1162, %v1956
        %v2033 = vsel %vm1053, %v1163, %v1958
        %v2034 = vsel %vm1053, %v1164, %v1960
        %v2035 = vsel %vm1053, %v1165, %v1962
        %v2036 = vsel %vm1053, %v1166, %v1964
        %v2037 = vsel %vm1322, %v2029, %v1974
        %v2038 = vsel %vm1322, %v2030, %v1976
        %v2039 = vsel %vm1322, %v2031, %v1978
        %v2040 = vsel %vm1322, %v2032, %v1980
        %v2041 = vsel %vm1322, %v2033, %v1982
        %v2042 = vsel %vm1322, %v2034, %v1984
        %v2043 = vsel %vm1322, %v2035, %v1986
        %v2044 = vsel %vm1322, %v2036, %v1988
        %vm2045 = vcmask 916480
        %v2046 = vsel %vm2045, %v2037, %v2006
        %v2047 = vsel %vm2045, %v2038, %v2008
        %v2048 = vsel %vm2045, %v2039, %v2010
        %v2049 = vsel %vm2045, %v2040, %v2012
        %v2050 = vsel %vm2045, %v2041, %v2014
        %v2051 = vsel %vm2045, %v2042, %v2016
        %v2052 = vsel %vm2045, %v2043, %v2018
        %v2053 = vsel %vm2045, %v2044, %v2020
        %v2054 = vld [vmem:[%s19] sm:$0xff]
        %v2055 = vld [vmem:[%s19 + $0x8] sm:$0xff]
        %v2056 = vld [vmem:[%s19 + $0x10] sm:$0xff]
        %v2057 = vld [vmem:[%s19 + $0x18] sm:$0xff]
        %v2058 = vld [vmem:[%s19 + $0x20] sm:$0xff]
        %v2059 = vld [vmem:[%s19 + $0x28] sm:$0xff]
        %v2060 = vld [vmem:[%s19 + $0x30] sm:$0xff]
        %v2061 = vld [vmem:[%s19 + $0x38] sm:$0xff]
        %v2062 = vld [vmem:[%s19 + $0x40] sm:$0xff]
        %v2063 = vld [vmem:[%s19 + $0x48] sm:$0xff]
        %v2064 = vld [vmem:[%s19 + $0x50] sm:$0xff]
        %v2065 = vld [vmem:[%s19 + $0x58] sm:$0xff]
        %v2066 = vld [vmem:[%s19 + $0x60] sm:$0xff]
        %v2067 = vld [vmem:[%s19 + $0x68] sm:$0xff]
        %v2068 = vld [vmem:[%s19 + $0x70] sm:$0xff]
        %v2069 = vld [vmem:[%s19 + $0x78] sm:$0xff]
        %v2070 = vld [vmem:[%s19 + $0x80] sm:$0xff]
        %v2071 = vld [vmem:[%s19 + $0x88] sm:$0xff]
        %v2072 = vld [vmem:[%s19 + $0x90] sm:$0xff]
        %v2073 = vld [vmem:[%s19 + $0x98] sm:$0xff]
        %v2074 = vld [vmem:[%s19 + $0xa0] sm:$0xff]
        %v2075 = vld [vmem:[%s19 + $0xa8] sm:$0xff]
        %v2076 = vld [vmem:[%s19 + $0xb0] sm:$0xff]
        %v2077 = vld [vmem:[%s19 + $0xb8] sm:$0xff]
        %v2078 = vld [vmem:[%s19 + $0xc0] sm:$0xff]
        %v2079 = vld [vmem:[%s19 + $0xc8] sm:$0xff]
        %v2080 = vld [vmem:[%s19 + $0xd0] sm:$0xff]
        %v2081 = vld [vmem:[%s19 + $0xd8] sm:$0xff]
        %v2082 = vld [vmem:[%s19 + $0xe0] sm:$0xff]
        %v2083 = vld [vmem:[%s19 + $0xe8] sm:$0xff]
        %v2084 = vld [vmem:[%s20] sm:$0x1]
        %v2086 = vperm.slane %v2084, 0
        %v2088 = vsel %vm2045, %v2006, 0
        %v2090 = vsel %vm2045, %v2008, 0
        %v2092 = vsel %vm2045, %v2010, 0
        %v2094 = vsel %vm2045, %v2012, 0
        %v2096 = vsel %vm2045, %v2014, 0
        %v2098 = vsel %vm2045, %v2016, 0
        %v2100 = vsel %vm2045, %v2018, 0
        %v2102 = vsel %vm2045, %v2020, 0
        %2104 = vmatpush.msra.mxu0 %v2069
        %2105 = vmatpush.msra.mxu0 %v2068
        %2106 = vmatpush.msra.mxu0 %v2067
        %2107 = vmatpush.msra.mxu0 %v2066
        %2108 = vmatpush.msra.mxu0 %v2065
        %2109 = vmatpush.msra.mxu0 %v2064
        %2110 = vmatpush.msra.mxu0 %v2063
        %2111 = vmatpush.msra.mxu0 %v2062
        %2112 = vmatpush.msra.mxu0 %v2061
        %2113 = vmatpush.msra.mxu0 %v2060
        %2114 = vmatpush.msra.mxu0 %v2059
        %2115 = vmatpush.msra.mxu0 %v2058
        %2116 = vmatpush.msra.mxu0 %v2057
        %2117 = vmatpush.msra.mxu0 %v2056
        %2118 = vmatpush.msra.mxu0 %v2055
        %2119 = vmatpush.msra.mxu0 %v2054
        %2120 = vmatmul.f32.gmra.mxu0 %v2046
        %v2121 = vpop.f32.mrf.mxu0
        %v2122 = vadd.f32 %v2086, %v2121
        %2123 = vmatmul.f32.gmra.mxu0 %v2047
        %v2124 = vpop.f32.mrf.mxu0
        %v2125 = vadd.f32 %v2086, %v2124
        %2126 = vmatmul.f32.gmra.mxu0 %v2048
        %v2127 = vpop.f32.mrf.mxu0
        %v2128 = vadd.f32 %v2086, %v2127
        %2129 = vmatmul.f32.gmra.mxu0 %v2049
        %v2130 = vpop.f32.mrf.mxu0
        %v2131 = vadd.f32 %v2086, %v2130
        %2132 = vmatmul.f32.gmra.mxu0 %v2050
        %v2133 = vpop.f32.mrf.mxu0
        %v2134 = vadd.f32 %v2086, %v2133
        %2135 = vmatmul.f32.gmra.mxu0 %v2051
        %v2136 = vpop.f32.mrf.mxu0
        %v2137 = vadd.f32 %v2086, %v2136
        %2138 = vmatmul.f32.gmra.mxu0 %v2052
        %v2139 = vpop.f32.mrf.mxu0
        %v2140 = vadd.f32 %v2086, %v2139
        %2141 = vmatmul.f32.gmra.mxu0 %v2053
        %v2142 = vpop.f32.mrf.mxu0
        %v2143 = vadd.f32 %v2086, %v2142
        %2144 = vdwg.mxu0
        %2145 = vmatpush.msra.mxu0 0.0
        %2146 = vmatpush.msra.mxu0 0.0
        %2147 = vmatpush.msra.mxu0 %v2083
        %2148 = vmatpush.msra.mxu0 %v2082
        %2149 = vmatpush.msra.mxu0 %v2081
        %2150 = vmatpush.msra.mxu0 %v2080
        %2151 = vmatpush.msra.mxu0 %v2079
        %2152 = vmatpush.msra.mxu0 %v2078
        %2153 = vmatpush.msra.mxu0 %v2077
        %2154 = vmatpush.msra.mxu0 %v2076
        %2155 = vmatpush.msra.mxu0 %v2075
        %2156 = vmatpush.msra.mxu0 %v2074
        %2157 = vmatpush.msra.mxu0 %v2073
        %2158 = vmatpush.msra.mxu0 %v2072
        %2159 = vmatpush.msra.mxu0 %v2071
        %2160 = vmatpush.msra.mxu0 %v2070
        %2161 = vmatmul.f32.gmra.mxu0 %v2088
        %v2162 = vpop.f32.mrf.mxu0
        %v2163 = vadd.f32 %v2122, %v2162
        %2164 = vmatmul.f32.gmra.mxu0 %v2090
        %v2165 = vpop.f32.mrf.mxu0
        %v2166 = vadd.f32 %v2125, %v2165
        %2167 = vmatmul.f32.gmra.mxu0 %v2092
        %v2168 = vpop.f32.mrf.mxu0
        %v2169 = vadd.f32 %v2128, %v2168
        %2170 = vmatmul.f32.gmra.mxu0 %v2094
        %v2171 = vpop.f32.mrf.mxu0
        %v2172 = vadd.f32 %v2131, %v2171
        %2173 = vmatmul.f32.gmra.mxu0 %v2096
        %v2174 = vpop.f32.mrf.mxu0
        %v2175 = vadd.f32 %v2134, %v2174
        %2176 = vmatmul.f32.gmra.mxu0 %v2098
        %v2177 = vpop.f32.mrf.mxu0
        %v2178 = vadd.f32 %v2137, %v2177
        %2179 = vmatmul.f32.gmra.mxu0 %v2100
        %v2180 = vpop.f32.mrf.mxu0
        %v2181 = vadd.f32 %v2140, %v2180
        %2182 = vmatmul.f32.gmra.mxu0 %v2102
        %v2183 = vpop.f32.mrf.mxu0
        %v2184 = vadd.f32 %v2143, %v2183
        %2185 = vdwg.mxu0
        %2186 = vadd.xlane.f32.xlu0 %v2163
        %v2187 = vpop.xlane.xlu0 %2186
        %2188 = vadd.xlane.f32.xlu0 %v2166
        %v2189 = vpop.xlane.xlu0 %2188
        %2190 = vadd.xlane.f32.xlu0 %v2169
        %v2191 = vpop.xlane.xlu0 %2190
        %2192 = vadd.xlane.f32.xlu0 %v2172
        %v2193 = vpop.xlane.xlu0 %2192
        %2194 = vadd.xlane.f32.xlu0 %v2175
        %v2195 = vpop.xlane.xlu0 %2194
        %2196 = vadd.xlane.f32.xlu0 %v2178
        %v2197 = vpop.xlane.xlu0 %2196
        %2198 = vadd.xlane.f32.xlu0 %v2181
        %v2199 = vpop.xlane.xlu0 %2198
        %2200 = vadd.xlane.f32.xlu0 %v2184
        %v2201 = vpop.xlane.xlu0 %2200
        %v2202 = vrcp.pop 128.0
        %v2203 = vmul.f32 128.0, %v2202
        %v2204 = vsub.f32 1.0, %v2203
        %v2205 = vmul.f32 %v2202, %v2204
        %v2206 = vadd.f32 %v2202, %v2205
        %vm2207 = vweird.f32 %v2202
        %v2208 = vsel %vm2207, %v2202, %v2206
        %v2209 = vmul.f32 %v2187, %v2208
        %v2210 = vmul.f32 %v2189, %v2208
        %v2211 = vmul.f32 %v2191, %v2208
        %v2212 = vmul.f32 %v2193, %v2208
        %v2213 = vmul.f32 %v2195, %v2208
        %v2214 = vmul.f32 %v2197, %v2208
        %v2215 = vmul.f32 %v2199, %v2208
        %v2216 = vmul.f32 %v2201, %v2208
        %v2217 = vsub.f32 %v2163, %v2209
        %v2218 = vsub.f32 %v2166, %v2210
        %v2219 = vsub.f32 %v2169, %v2211
        %v2220 = vsub.f32 %v2172, %v2212
        %v2221 = vsub.f32 %v2175, %v2213
        %v2222 = vsub.f32 %v2178, %v2214
        %v2223 = vsub.f32 %v2181, %v2215
        %v2224 = vsub.f32 %v2184, %v2216
        %v2225 = vmul.f32 %v2217, %v2217
        %v2226 = vmul.f32 %v2218, %v2218
        %v2227 = vmul.f32 %v2219, %v2219
        %v2228 = vmul.f32 %v2220, %v2220
        %v2229 = vmul.f32 %v2221, %v2221
        %v2230 = vmul.f32 %v2222, %v2222
        %v2231 = vmul.f32 %v2223, %v2223
        %v2232 = vmul.f32 %v2224, %v2224
        %2233 = vadd.xlane.f32.xlu0 %v2225
        %v2234 = vpop.xlane.xlu0 %2233
        %2235 = vadd.xlane.f32.xlu0 %v2226
        %v2236 = vpop.xlane.xlu0 %2235
        %2237 = vadd.xlane.f32.xlu0 %v2227
        %v2238 = vpop.xlane.xlu0 %2237
        %2239 = vadd.xlane.f32.xlu0 %v2228
        %v2240 = vpop.xlane.xlu0 %2239
        %2241 = vadd.xlane.f32.xlu0 %v2229
        %v2242 = vpop.xlane.xlu0 %2241
        %2243 = vadd.xlane.f32.xlu0 %v2230
        %v2244 = vpop.xlane.xlu0 %2243
        %2245 = vadd.xlane.f32.xlu0 %v2231
        %v2246 = vpop.xlane.xlu0 %2245
        %2247 = vadd.xlane.f32.xlu0 %v2232
        %v2248 = vpop.xlane.xlu0 %2247
        %v2249 = vmul.f32 %v2234, %v2208
        %v2250 = vmul.f32 %v2236, %v2208
        %v2251 = vmul.f32 %v2238, %v2208
        %v2252 = vmul.f32 %v2240, %v2208
        %v2253 = vmul.f32 %v2242, %v2208
        %v2254 = vmul.f32 %v2244, %v2208
        %v2255 = vmul.f32 %v2246, %v2208
        %v2256 = vmul.f32 %v2248, %v2208
        %v2257 = vadd.f32 %v2249, 1e-05
        %v2258 = vadd.f32 %v2250, 1e-05
        %v2259 = vadd.f32 %v2251, 1e-05
        %v2260 = vadd.f32 %v2252, 1e-05
        %v2261 = vadd.f32 %v2253, 1e-05
        %v2262 = vadd.f32 %v2254, 1e-05
        %v2263 = vadd.f32 %v2255, 1e-05
        %v2264 = vadd.f32 %v2256, 1e-05
        %v2265 = vrsqrt.pop %v2257
        %v2266 = vmul.f32 %v2265, %v2257
        %v2267 = vmul.f32 %v2266, %v2265
        %v2268 = vmul.f32 0.5, %v2267
        %v2269 = vsub.f32 1.5, %v2268
        %v2270 = vmul.f32 %v2265, %v2269
        %vm2271 = vweird.f32 %v2257
        %vm2272 = vweird.f32 %v2265
        %vm2273 = vmor %vm2271, %vm2272
        %v2274 = vsel %vm2273, %v2265, %v2270
        %v2275 = vrsqrt.pop %v2258
        %v2276 = vmul.f32 %v2275, %v2258
        %v2277 = vmul.f32 %v2276, %v2275
        %v2278 = vmul.f32 0.5, %v2277
        %v2279 = vsub.f32 1.5, %v2278
        %v2280 = vmul.f32 %v2275, %v2279
        %vm2281 = vweird.f32 %v2258
        %vm2282 = vweird.f32 %v2275
        %vm2283 = vmor %vm2281, %vm2282
        %v2284 = vsel %vm2283, %v2275, %v2280
        %v2285 = vrsqrt.pop %v2259
        %v2286 = vmul.f32 %v2285, %v2259
        %v2287 = vmul.f32 %v2286, %v2285
        %v2288 = vmul.f32 0.5, %v2287
        %v2289 = vsub.f32 1.5, %v2288
        %v2290 = vmul.f32 %v2285, %v2289
        %vm2291 = vweird.f32 %v2259
        %vm2292 = vweird.f32 %v2285
        %vm2293 = vmor %vm2291, %vm2292
        %v2294 = vsel %vm2293, %v2285, %v2290
        %v2295 = vrsqrt.pop %v2260
        %v2296 = vmul.f32 %v2295, %v2260
        %v2297 = vmul.f32 %v2296, %v2295
        %v2298 = vmul.f32 0.5, %v2297
        %v2299 = vsub.f32 1.5, %v2298
        %v2300 = vmul.f32 %v2295, %v2299
        %vm2301 = vweird.f32 %v2260
        %vm2302 = vweird.f32 %v2295
        %vm2303 = vmor %vm2301, %vm2302
        %v2304 = vsel %vm2303, %v2295, %v2300
        %v2305 = vrsqrt.pop %v2261
        %v2306 = vmul.f32 %v2305, %v2261
        %v2307 = vmul.f32 %v2306, %v2305
        %v2308 = vmul.f32 0.5, %v2307
        %v2309 = vsub.f32 1.5, %v2308
        %v2310 = vmul.f32 %v2305, %v2309
        %vm2311 = vweird.f32 %v2261
        %vm2312 = vweird.f32 %v2305
        %vm2313 = vmor %vm2311, %vm2312
        %v2314 = vsel %vm2313, %v2305, %v2310
        %v2315 = vrsqrt.pop %v2262
        %v2316 = vmul.f32 %v2315, %v2262
        %v2317 = vmul.f32 %v2316, %v2315
        %v2318 = vmul.f32 0.5, %v2317
        %v2319 = vsub.f32 1.5, %v2318
        %v2320 = vmul.f32 %v2315, %v2319
        %vm2321 = vweird.f32 %v2262
        %vm2322 = vweird.f32 %v2315
        %vm2323 = vmor %vm2321, %vm2322
        %v2324 = vsel %vm2323, %v2315, %v2320
        %v2325 = vrsqrt.pop %v2263
        %v2326 = vmul.f32 %v2325, %v2263
        %v2327 = vmul.f32 %v2326, %v2325
        %v2328 = vmul.f32 0.5, %v2327
        %v2329 = vsub.f32 1.5, %v2328
        %v2330 = vmul.f32 %v2325, %v2329
        %vm2331 = vweird.f32 %v2263
        %vm2332 = vweird.f32 %v2325
        %vm2333 = vmor %vm2331, %vm2332
        %v2334 = vsel %vm2333, %v2325, %v2330
        %v2335 = vrsqrt.pop %v2264
        %v2336 = vmul.f32 %v2335, %v2264
        %v2337 = vmul.f32 %v2336, %v2335
        %v2338 = vmul.f32 0.5, %v2337
        %v2339 = vsub.f32 1.5, %v2338
        %v2340 = vmul.f32 %v2335, %v2339
        %vm2341 = vweird.f32 %v2264
        %vm2342 = vweird.f32 %v2335
        %vm2343 = vmor %vm2341, %vm2342
        %v2344 = vsel %vm2343, %v2335, %v2340
        %v2345 = vmul.f32 %v2217, %v2274
        %v2346 = vmul.f32 %v2218, %v2284
        %v2347 = vmul.f32 %v2219, %v2294
        %v2348 = vmul.f32 %v2220, %v2304
        %v2349 = vmul.f32 %v2221, %v2314
        %v2350 = vmul.f32 %v2222, %v2324
        %v2351 = vmul.f32 %v2223, %v2334
        %v2352 = vmul.f32 %v2224, %v2344
        %v2353 = vld [vmem:[%s21] sm:$0x1]
        %v2355 = vperm.slane %v2353, 0
        %v2357 = vmul.f32 %v2345, %v2355
        %v2358 = vmul.f32 %v2346, %v2355
        %v2359 = vmul.f32 %v2347, %v2355
        %v2360 = vmul.f32 %v2348, %v2355
        %v2361 = vmul.f32 %v2349, %v2355
        %v2362 = vmul.f32 %v2350, %v2355
        %v2363 = vmul.f32 %v2351, %v2355
        %v2364 = vmul.f32 %v2352, %v2355
        %v2365 = vld [vmem:[%s22] sm:$0x1]
        %v2367 = vperm.slane %v2365, 0
        %v2369 = vadd.f32 %v2357, %v2367
        %v2370 = vadd.f32 %v2358, %v2367
        %v2371 = vadd.f32 %v2359, %v2367
        %v2372 = vadd.f32 %v2360, %v2367
        %v2373 = vadd.f32 %v2361, %v2367
        %v2374 = vadd.f32 %v2362, %v2367
        %v2375 = vadd.f32 %v2363, %v2367
        %v2376 = vadd.f32 %v2364, %v2367
        %2377 = vst [vmem:[%s721] sm:$0xff] %v2369
        %2378 = vst [vmem:[%s721 + $0x8] sm:$0xff] %v2370
        %2379 = vst [vmem:[%s721 + $0x10] sm:$0xff] %v2371
        %2380 = vst [vmem:[%s721 + $0x18] sm:$0xff] %v2372
        %2381 = vst [vmem:[%s721 + $0x20] sm:$0xff] %v2373
        %2382 = vst [vmem:[%s721 + $0x28] sm:$0xff] %v2374
        %2383 = vst [vmem:[%s721 + $0x30] sm:$0xff] %v2375
        %2384 = vst [vmem:[%s721 + $0x38] sm:$0xff] %v2376
        %s2385 = sand.u32 %s534, 1
        %s2386 = scalar_lea.sflag [#allocation4], %s2385
        %s2387 = sand.u32 %s534, 1
        %s2388 = smul.addr %s2387, 64
        %s2389 = scalar_lea.vmem [#allocation5], %s2388
        // Predicated region
        $region117: #{tpu_custom_call.1} parent=111 // pred_check
          %p2390 = pneg %p544
        $region118: #{tpu_custom_call.1} parent=111 // pred_check_branch
          %2392 = sbr.rel (%p2390) target = $region120
        $region119: #{tpu_custom_call.1} parent=111 // pred_region
          %s2393 = smul.u32 8, %s38
          %2395 = vsyncadd %s2386, 0
          %s2396 = smul.addr %s2393, 8
          %s2397 = scalar_lea.hbm %s23, %s2396
          %s2398 = sshll.u32 %s2389, 4
          %s2399 = int_to_ptr.vmem [resolvable:$true] %s2398
          %s2400 = sshll.u32 %s2397, 4
          %s2401 = int_to_ptr.hbm [resolvable:$true] %s2400
          %2406 = dma.vmem_to_hbm [thread:$0]  %s2399, 1024, %s2401, %s2386, 128, 128, 8
        $region120: #{tpu_custom_call.1} parent=111 // pred_fallthru
          _
      $region112: #{tpu_custom_call.1} parent=5 // pred_fallthru
        _
      %p2407 = scmp.le.s32.totalorder 2, %s33
      // Predicated region
      $region121: #{tpu_custom_call.1} parent=5 // pred_check
        %p2408 = pneg %p2407
      $region122: #{tpu_custom_call.1} parent=5 // pred_check_branch
        %2410 = sbr.rel (%p2408) target = $region124
      $region123: #{tpu_custom_call.1} parent=5 // pred_region
        %s2411 = ssub.s32 %s33, 2
        // Predicated region
        $region125: #{tpu_custom_call.1} parent=123 // pred_check
          %p2412 = pneg %p550
        $region126: #{tpu_custom_call.1} parent=123 // pred_check_branch
          %2414 = sbr.rel (%p2412) target = $region128
        $region127: #{tpu_custom_call.1} parent=123 // pred_region
          %s2415 = sand.u32 %s535, 1
          %s2416 = scalar_lea.sflag [#allocation4], %s2415
          %s2417 = sand.u32 %s535, 1
          %s2418 = smul.addr %s2417, 64
          %s2419 = scalar_lea.vmem [#allocation5], %s2418
          %2421 = dma.done %s2416, 1024
        $region128: #{tpu_custom_call.1} parent=123 // pred_fallthru
          _
      $region124: #{tpu_custom_call.1} parent=5 // pred_fallthru
        _
    $region6: #{tpu_custom_call.1} parent=1 // loop_footer
      %s37 = sadd.s32 1, %s33
    $region7: #{tpu_custom_call.1} parent=1 // loop_footer_branch
      %32 = sbr.rel target = $region3
    $region8: #{tpu_custom_call.1} parent=1 // loop_exit
      _
    %2422 = vsyncpa [#allocation3], 1
    %s2423 = scalar_lea.sflag [#allocation3], 1
    %2424 = vsyncpa %s2423, 1
    %2425 = vsyncpa [#allocation4], 1
    %s2426 = scalar_lea.sflag [#allocation4], 1
    %2427 = vsyncpa %s2426, 1

</llo_original>
